<compile_context>
chip_gen: v6e
topology: v6e:2x2x1
jax: 0.10.0
libtpu: 0.0.40
codegen_flags: <defaults>
</compile_context>

<pallas_src>
import math

import jax
import jax.numpy as jnp
from jax import lax
from jax.experimental import pallas as pl
from jax.experimental.pallas import tpu as pltpu

# ---- model hyper-parameters (match the PyTorch module config) -------------------
D = 64            # model dim
H = 4             # attention heads
DH = D // H       # head dim
ROT = 8           # rotary_emb_dim (d_rope)
R2 = ROT // 2
MLP_H = 128       # SwiGLU hidden dim
EPS = 1e-5        # RMSNorm(d, eps=1e-5)
SCALE = 1.0 / math.sqrt(DH)
NEG_INF = -1e30   # additive mask constant (scores stay f32)


# ---------------------------------------------------------------------------------
# Pallas kernel: one fused Block forward for TS = sb*S packed tokens.
# ---------------------------------------------------------------------------------
def make_block_kernel(has_residual, sb, S, per_seq):
    def kernel(*refs):
        if has_residual:
            (x_ref, res_ref, rs_ref, n1_ref, n2_ref, cos_ref, sin_ref,
             wall_ref, wo_ref, wfc1_ref, wfc2_ref, out_ref) = refs
        else:
            (x_ref, rs_ref, n1_ref, n2_ref, cos_ref, sin_ref,
             wall_ref, wo_ref, wfc1_ref, wfc2_ref, out_ref) = refs
            res_ref = None

        TS = x_ref.shape[0]
        bf16 = jnp.bfloat16

        x = x_ref[...]                                        # (TS, D) f32
        residual = x if res_ref is None else x + res_ref[...]

        def rms_norm(v, w):                                   # F.rms_norm, f32 math
            ms = jnp.mean(v * v, axis=-1, keepdims=True)
            return v * lax.rsqrt(ms + EPS) * w

        # ---- norm1 + single fused batched QKV projection (rope folded in) -------
        h1 = rms_norm(residual, n1_ref[...]).astype(bf16)
        hb = jnp.broadcast_to(h1[None], (5 * H, TS, D))
        proj = lax.dot_general(hb, wall_ref[...],
                               (((2,), (1,)), ((0,), (0,))),
                               preferred_element_type=jnp.float32)  # (5H, TS, DH)
        # TODO(synk): fold this further into one lane-dense (TS,64)@(64,320) 2-D matmul
        # once the DH=16 head-split relayout cost has been verified on-target.

        cos = cos_ref[...][None]                              # (1, TS, DH)
        sin = sin_ref[...][None]
        qk = proj[:2 * H] * cos + proj[2 * H:4 * H] * sin     # NeoX rope FMA
        q, k, v = qk[:H], qk[H:], proj[4 * H:]                # (H, TS, DH) each

        def attend(qh, kh, vh, L, block_diag):
            # causal (optionally block-diagonal) attention, heads batched.
            s = jnp.einsum("hqd,hkd->hqk", qh.astype(bf16), kh.astype(bf16),
                           preferred_element_type=jnp.float32) * SCALE
            row = lax.broadcasted_iota(jnp.int32, (L, L), 0)
            col = lax.broadcasted_iota(jnp.int32, (L, L), 1)
            allowed = col <= row
            if block_diag:
                allowed &= col >= rs_ref[...]                 # same-sequence only
            s = jnp.where(allowed[None], s, NEG_INF)
            m = jnp.max(s, axis=-1, keepdims=True)
            p = jnp.exp(s - m)
            p = p * pl.reciprocal(jnp.sum(p, axis=-1, keepdims=True), approx=True)
            return jnp.einsum("hqk,hkd->hqd", p.astype(bf16), vh.astype(bf16),
                              preferred_element_type=jnp.float32)

        if per_seq and sb > 1:
            # per-sequence attention: no cross-sequence garbage in scores / softmax.
            o = jnp.concatenate(
                [attend(q[:, b * S:(b + 1) * S], k[:, b * S:(b + 1) * S],
                        v[:, b * S:(b + 1) * S], S, False) for b in range(sb)],
                axis=1)                                       # (H, TS, DH)
        else:
            o = attend(q, k, v, TS, sb > 1)
        # TODO(synk): for S >> 512 the score matrix should be KV-tiled (flash style)
        # instead of materialised per sequence.

        # ---- out_proj: batched matmul + head reduction (concat folded away) -----
        attn = jnp.sum(lax.dot_general(o.astype(bf16), wo_ref[...],
                                       (((2,), (1,)), ((0,), (0,))),
                                       preferred_element_type=jnp.float32), axis=0)

        residual2 = attn + residual

        # ---- norm2 + SwiGLU ------------------------------------------------------
        h2 = rms_norm(residual2, n2_ref[...]).astype(bf16)
        hg = jnp.dot(h2, wfc1_ref[...], preferred_element_type=jnp.float32)  # (TS, 2H)
        lin = hg[:, :MLP_H]
        gate = hg[:, MLP_H:]
        act = (lin * (gate * jax.nn.sigmoid(gate))).astype(bf16)             # silu(g)*h
        mlp_out = jnp.dot(act, wfc2_ref[...], preferred_element_type=jnp.float32)

        # ---- single lane-dense (TS, 128) store: [mlp_out | residual2] -----------
        out_ref[...] = jnp.concatenate([mlp_out, residual2], axis=-1)

    return kernel


# ---------------------------------------------------------------------------------
# glue
# ---------------------------------------------------------------------------------
def rotary_cache(base, dim, msl):
    inv_freq = 1.0 / base ** (jnp.arange(0, dim, 2, dtype=jnp.float32) / dim)
    t = jnp.arange(msl, dtype=jnp.float32)
    freqs = jnp.outer(t, inv_freq)
    return jnp.cos(freqs), jnp.sin(freqs)


def _neox_rot_matrix():
    """(DH, DH) signed permutation P: (x @ P)[c] = -x[c+R2] for c<R2,
    +x[c-R2] for R2<=c<ROT, 0 elsewhere (NeoX rotate-half as a matmul)."""
    P = jnp.zeros((DH, DH), jnp.float32)
    idx = jnp.arange(R2)
    P = P.at[idx + R2, idx].set(-1.0)
    P = P.at[idx, idx + R2].set(1.0)
    return P


def _pick_seqs_per_block(B, S):
    """Sequences packed per grid step. Bigger blocks amortise per-step overhead
    (cap 512 rows when S >= 128, else 128 to bound cross-sequence mask waste);
    prefer keeping G >= 2 so both v7x TensorCores can be used, unless that would
    more than halve the block size."""
    max_rows = 512 if S >= 128 else 128
    cands = []
    for c in range(1, B + 1):
        if B % c:
            continue
        ts = c * S
        if ts > max_rows:
            continue
        if ts % 8 != 0 and ts != B * S:     # (8, 128) sublane rule on block rows
            continue
        cands.append(c)
    if not cands:
        cands = [1] if (S % 8 == 0 or B == 1) else [B]
    best = max(cands, key=lambda c: c * S)
    multi = [c for c in cands if B // c >= 2]
    if multi:
        b2 = max(multi, key=lambda c: c * S)
        if 2 * b2 * S >= best * S:
            best = b2
    return best


def block_forward(x_flat, residual_flat, cu_seqlens, max_seqlen, seq_idx, params):
    """x_flat: (T, D) flat tokens; equal-length sequences assumed (synthetic harness)."""
    del seq_idx  # only used by the Mamba2 mixer branch; mixer here is CausalMHA
    T, d = x_flat.shape
    B = cu_seqlens.shape[0] - 1
    S = int(max_seqlen)
    assert B * S == T and d == D, "harness assumes equal-length sequences, model dim D"

    sb = _pick_seqs_per_block(B, S)
    TS = sb * S
    G = T // TS
    per_seq = (S >= 128) and (sb > 1)

    # Rotary tables expanded to full head width; positions restart every S tokens.
    cos_t, sin_t = rotary_cache(10000.0, ROT, 2048)
    pos = jnp.arange(TS) % S
    lane = jnp.arange(DH)
    in_rope = (lane < ROT)[None, :]
    cosd = jnp.where(in_rope, cos_t[pos][:, lane % R2], 1.0).astype(jnp.float32)
    sind = jnp.where(in_rope, sin_t[pos][:, lane % R2], 0.0).astype(jnp.float32)

    # Per-row sequence start (tiny (TS,1) vector): used by the in-kernel
    # block-diagonal mask in the packed-attention path. Replaces the old (TS,TS) bias.
    row_start = ((jnp.arange(TS) // S) * S).astype(jnp.int32).reshape(TS, 1)

    # Fused projection weights: batch layout [q | k | q@P | k@P | v] on the head axis,
    # with the NeoX rotate-half folded into the q@P / k@P copies.
    P = _neox_rot_matrix()
    wqkv = params["wqkv"].reshape(D, 3, H, DH)
    wq = jnp.transpose(wqkv[:, 0], (1, 0, 2))                 # (H, D, DH)
    wk = jnp.transpose(wqkv[:, 1], (1, 0, 2))
    wv = jnp.transpose(wqkv[:, 2], (1, 0, 2))
    wqr = jnp.einsum("hdc,ce->hde", wq, P)
    wkr = jnp.einsum("hdc,ce->hde", wk, P)

    bf16 = jnp.bfloat16
    w_all = jnp.concatenate([wq, wk, wqr, wkr, wv], axis=0).astype(bf16)  # (5H, D, DH)
    wo = params["out_proj"].reshape(H, DH, D).astype(bf16)
    wfc1 = params["fc1"].astype(bf16)
    wfc2 = params["fc2"].astype(bf16)
    n1 = params["norm1_w"].reshape(1, D).astype(jnp.float32)
    n2 = params["norm2_w"].reshape(1, D).astype(jnp.float32)

    has_res = residual_flat is not None
    tok_spec = pl.BlockSpec((TS, D), lambda g: (g, 0))
    out_spec = pl.BlockSpec((TS, 2 * D), lambda g: (g, 0))

    def rep(shape):
        nd = len(shape)
        return pl.BlockSpec(shape, lambda g, _nd=nd: (0,) * _nd)

    in_specs = [tok_spec]
    args = [x_flat]
    if has_res:                                   # skip DMAing a zeros residual
        in_specs.append(tok_spec)
        args.append(residual_flat.reshape(T, D))
    # TODO(synk): when blocks are chained, the packed (T, 128) [out | residual] slab
    # could be consumed directly as one lane-dense input instead of two (T, 64) ones.
    in_specs += [rep((TS, 1)), rep((1, D)), rep((1, D)), rep((TS, DH)), rep((TS, DH)),
                 rep((5 * H, D, DH)), rep((H, DH, D)), rep((D, 2 * MLP_H)),
                 rep((MLP_H, D))]
    args += [row_start, n1, n2, cosd, sind, w_all, wo, wfc1, wfc2]

    # advisory cost estimate for XLA's scheduler
    kv_len = S if (per_seq or sb == 1) else TS
    flops = T * (2 * D * 5 * D + 4 * kv_len * D + 2 * D * D + 4 * D * MLP_H
                 + 2 * MLP_H * D)
    transcendentals = T * (H * kv_len + MLP_H + 2)
    w_bytes = (5 * H * D * DH + H * DH * D + 2 * D * MLP_H + MLP_H * D) * 2
    tab_bytes = (2 * TS * DH + TS + 2 * D) * 4
    bytes_accessed = (T * D * 4 * (2 if has_res else 1) + T * 2 * D * 4
                      + G * (w_bytes + tab_bytes))

    packed = pl.pallas_call(
        make_block_kernel(has_res, sb, S, per_seq),
        out_shape=jax.ShapeDtypeStruct((T, 2 * D), jnp.float32),
        grid=(G,),
        in_specs=in_specs,
        out_specs=out_spec,
        compiler_params=pltpu.CompilerParams(
            dimension_semantics=("parallel",),
            vmem_limit_bytes=32 * 1024 * 1024),
        cost_estimate=pl.CostEstimate(flops=int(flops),
                                      transcendentals=int(transcendentals),
                                      bytes_accessed=int(bytes_accessed)),
    )(*args)

    out = packed[:, :D]            # free XLA slices outside the kernel
    resid = packed[:, D:]
    return out, resid


# ---------------------------------------------------------------------------------
# pure-JAX reference with the same precision policy (bf16 matmul inputs, f32
# accumulation; f32 norms / rope / softmax) for the correctness check.
# ---------------------------------------------------------------------------------
def ref_block(x_flat, residual_flat, max_seqlen, params):
    T, d = x_flat.shape
    S = max_seqlen
    B = T // S
    bf16 = jnp.bfloat16

    def mm(a, b):
        return jnp.dot(a.astype(bf16), b.astype(bf16), preferred_element_type=jnp.float32)

    x = x_flat.reshape(B, S, d)
    res = jnp.zeros_like(x) if residual_flat is None else residual_flat.reshape(B, S, d)
    residual = x + res

    def rms(v, w):
        return v / jnp.sqrt(jnp.mean(v * v, -1, keepdims=True) + EPS) * w

    h = rms(residual, params["norm1_w"])
    qkv = mm(h, params["wqkv"]).reshape(B, S, 3 * H, DH)
    q, k, v = qkv[:, :, :H], qkv[:, :, H:2 * H], qkv[:, :, 2 * H:]

    cos_t, sin_t = rotary_cache(10000.0, ROT, 2048)
    cos = cos_t[:S][None, :, None, :]
    sin = sin_t[:S][None, :, None, :]

    def rope(t):
        x1, x2 = t[..., :R2], t[..., R2:ROT]
        return jnp.concatenate([x1 * cos - x2 * sin, x2 * cos + x1 * sin,
                                t[..., ROT:]], -1)

    q, k = rope(q), rope(k)
    s = jnp.einsum("bqhd,bkhd->bhqk", q.astype(bf16), k.astype(bf16),
                   preferred_element_type=jnp.float32) * SCALE
    mask = jnp.tril(jnp.ones((S, S), bool))
    s = jnp.where(mask, s, NEG_INF)
    p = jax.nn.softmax(s, axis=-1)
    o = jnp.einsum("bhqk,bkhd->bqhd", p.astype(bf16), v.astype(bf16),
                   preferred_element_type=jnp.float32).reshape(B, S, d)

    attn = mm(o, params["out_proj"])
    residual2 = attn + residual
    h2 = rms(residual2, params["norm2_w"])
    hg = mm(h2, params["fc1"])
    lin, gate = hg[..., :MLP_H], hg[..., MLP_H:]
    out = mm(jax.nn.silu(gate) * lin, params["fc2"])
    return out.reshape(T, d), residual2.reshape(T, d)


# ---------------------------------------------------------------------------------
if __name__ == "__main__":
    key = jax.random.PRNGKey(0)
    ks = jax.random.split(key, 10)

    def init(k, shape, fan_in):
        return jax.random.normal(k, shape, jnp.float32) / math.sqrt(fan_in)

    params = {
        "norm1_w": 1.0 + 0.02 * jax.random.normal(ks[0], (D,), jnp.float32),
        "norm2_w": 1.0 + 0.02 * jax.random.normal(ks[1], (D,), jnp.float32),
        "wqkv":    init(ks[2], (D, 3 * D), D),        # stored in x @ W form
        "out_proj": init(ks[3], (D, D), D),
        "fc1":     init(ks[4], (D, 2 * MLP_H), D),
        "fc2":     init(ks[5], (MLP_H, D), MLP_H),
    }

    def check(B, S, kx, kr, with_residual, tag):
        T = B * S
        x = jax.random.normal(kx, (T, D), jnp.float32)
        res = jax.random.normal(kr, (T, D), jnp.float32) if with_residual else None
        cu = jnp.arange(B + 1, dtype=jnp.int32) * S
        seq_idx = jnp.repeat(jnp.arange(B, dtype=jnp.int32), S)[None]   # Mamba-only arg
        out, resid = block_forward(x, res, cu, S, seq_idx, params)
        jax.block_until_ready((out, resid))
        r_out, r_res = ref_block(x, res, S, params)
        assert jnp.allclose(out, r_out, atol=1e-2, rtol=1e-2), f"output mismatch ({tag})"
        assert jnp.allclose(resid, r_res, atol=1e-2, rtol=1e-2), f"residual mismatch ({tag})"

    # small sequences: packed-attention path, first layer (residual=None) + later layer
    check(2, 16, ks[6], ks[7], False, "B2 S16 no-res")
    check(2, 16, ks[6], ks[7], True, "B2 S16 res")
    # longer sequences: per-sequence attention path, 2 grid steps (dual-TC on v7x)
    check(4, 128, ks[8], ks[9], True, "B4 S128 res")

    # TODO(synk): ragged (NJT / unequal cu_seqlens) batches, sliding-window attention
    # and the Mamba2 mixer branch are not covered; this handles the CausalMHA+SwiGLU
    # block with equal-length sequences.
    print("KERNEL_OK")
</pallas_src>

<mosaic_0001>
module attributes {stable_mosaic.version = 11 : i64} {
  func.func @kernel(%arg0: i32, %arg1: memref<16x64xf32, #tpu.memory_space<vmem>>, %arg2: memref<16x1xi32, #tpu.memory_space<vmem>>, %arg3: memref<1x64xf32, #tpu.memory_space<vmem>>, %arg4: memref<1x64xf32, #tpu.memory_space<vmem>>, %arg5: memref<16x16xf32, #tpu.memory_space<vmem>>, %arg6: memref<16x16xf32, #tpu.memory_space<vmem>>, %arg7: memref<20x64x16xbf16, #tpu.memory_space<vmem>>, %arg8: memref<4x16x64xbf16, #tpu.memory_space<vmem>>, %arg9: memref<64x256xbf16, #tpu.memory_space<vmem>>, %arg10: memref<128x64xbf16, #tpu.memory_space<vmem>>, %arg11: memref<16x128xf32, #tpu.memory_space<vmem>>) attributes {dimension_semantics = [#tpu.dimension_semantics<parallel>], iteration_bounds = array<i64: 2>, scalar_prefetch = 0 : i64, scratch_operands = 0 : i64, tpu.core_type = #tpu.core_type<tc>, window_params = [{transform_indices = @transform_0, window_bounds = array<i64: 16, 64>}, {pipeline_mode = #tpu.pipeline_mode<synchronous>, transform_indices = @transform_1, window_bounds = array<i64: 16, 1>}, {pipeline_mode = #tpu.pipeline_mode<synchronous>, transform_indices = @transform_2, window_bounds = array<i64: 1, 64>}, {pipeline_mode = #tpu.pipeline_mode<synchronous>, transform_indices = @transform_3, window_bounds = array<i64: 1, 64>}, {pipeline_mode = #tpu.pipeline_mode<synchronous>, transform_indices = @transform_4, window_bounds = array<i64: 16, 16>}, {pipeline_mode = #tpu.pipeline_mode<synchronous>, transform_indices = @transform_5, window_bounds = array<i64: 16, 16>}, {pipeline_mode = #tpu.pipeline_mode<synchronous>, transform_indices = @transform_6, window_bounds = array<i64: 20, 64, 16>}, {pipeline_mode = #tpu.pipeline_mode<synchronous>, transform_indices = @transform_7, window_bounds = array<i64: 4, 16, 64>}, {pipeline_mode = #tpu.pipeline_mode<synchronous>, transform_indices = @transform_8, window_bounds = array<i64: 64, 256>}, {pipeline_mode = #tpu.pipeline_mode<synchronous>, transform_indices = @transform_9, window_bounds = array<i64: 128, 64>}, {transform_indices = @transform_10, window_bounds = array<i64: 16, 128>}]} {
    %c0 = arith.constant 0 : index
    %c0_0 = arith.constant 0 : index
    %0 = vector.load %arg1[%c0, %c0_0] : memref<16x64xf32, #tpu.memory_space<vmem>>, vector<16x64xf32>
    %c0_1 = arith.constant 0 : index
    %c0_2 = arith.constant 0 : index
    %1 = vector.load %arg3[%c0_1, %c0_2] : memref<1x64xf32, #tpu.memory_space<vmem>>, vector<1x64xf32>
    %2 = arith.mulf %0, %0 : vector<16x64xf32>
    %cst = arith.constant dense<0.000000e+00> : vector<16xf32>
    %3 = vector.multi_reduction <add>, %2, %cst [1] : vector<16x64xf32> to vector<16xf32>
    %4 = vector.shape_cast %3 : vector<16xf32> to vector<16x1xf32>
    %cst_3 = arith.constant 6.400000e+01 : f32
    %5 = vector.broadcast %cst_3 : f32 to vector<16x1xf32>
    %6 = arith.divf %4, %5 : vector<16x1xf32>
    %cst_4 = arith.constant 9.99999974E-6 : f32
    %7 = vector.broadcast %cst_4 : f32 to vector<16x1xf32>
    %8 = arith.addf %6, %7 : vector<16x1xf32>
    %9 = math.rsqrt %8 : vector<16x1xf32>
    %10 = vector.broadcast %9 : vector<16x1xf32> to vector<16x64xf32>
    %11 = arith.mulf %0, %10 : vector<16x64xf32>
    %12 = vector.broadcast %1 : vector<1x64xf32> to vector<16x64xf32>
    %13 = arith.mulf %11, %12 : vector<16x64xf32>
    %14 = arith.truncf %13 : vector<16x64xf32> to vector<16x64xbf16>
    %15 = vector.shape_cast %14 : vector<16x64xbf16> to vector<1x16x64xbf16>
    %16 = vector.shape_cast %15 : vector<1x16x64xbf16> to vector<1x16x64xbf16>
    %17 = vector.broadcast %16 : vector<1x16x64xbf16> to vector<20x16x64xbf16>
    %c0_5 = arith.constant 0 : index
    %c0_6 = arith.constant 0 : index
    %c0_7 = arith.constant 0 : index
    %18 = vector.load %arg7[%c0_5, %c0_6, %c0_7] : memref<20x64x16xbf16, #tpu.memory_space<vmem>>, vector<20x64x16xbf16>
    %cst_8 = arith.constant dense<0.000000e+00> : vector<20x16x16xf32>
    %19 = tpu.matmul %17, %18, %cst_8 {dimension_numbers = #tpu.dot_dimension_numbers<[2], [1], [1], [2], [0, 0, 0, 1, 1, 2], [0], [0]>} : vector<20x16x64xbf16>, vector<20x64x16xbf16>, vector<20x16x16xf32> -> vector<20x16x16xf32>
    %c0_9 = arith.constant 0 : index
    %c0_10 = arith.constant 0 : index
    %20 = vector.load %arg5[%c0_9, %c0_10] : memref<16x16xf32, #tpu.memory_space<vmem>>, vector<16x16xf32>
    %21 = vector.shape_cast %20 : vector<16x16xf32> to vector<1x16x16xf32>
    %c0_11 = arith.constant 0 : index
    %c0_12 = arith.constant 0 : index
    %22 = vector.load %arg6[%c0_11, %c0_12] : memref<16x16xf32, #tpu.memory_space<vmem>>, vector<16x16xf32>
    %23 = vector.shape_cast %22 : vector<16x16xf32> to vector<1x16x16xf32>
    %24 = vector.extract_strided_slice %19 {offsets = [0, 0, 0], sizes = [8, 16, 16], strides = [1, 1, 1]} : vector<20x16x16xf32> to vector<8x16x16xf32>
    %25 = vector.broadcast %21 : vector<1x16x16xf32> to vector<8x16x16xf32>
    %26 = arith.mulf %24, %25 : vector<8x16x16xf32>
    %27 = vector.extract_strided_slice %19 {offsets = [8, 0, 0], sizes = [8, 16, 16], strides = [1, 1, 1]} : vector<20x16x16xf32> to vector<8x16x16xf32>
    %28 = vector.broadcast %23 : vector<1x16x16xf32> to vector<8x16x16xf32>
    %29 = arith.mulf %27, %28 : vector<8x16x16xf32>
    %30 = arith.addf %26, %29 : vector<8x16x16xf32>
    %31 = vector.extract_strided_slice %30 {offsets = [0, 0, 0], sizes = [4, 16, 16], strides = [1, 1, 1]} : vector<8x16x16xf32> to vector<4x16x16xf32>
    %32 = vector.extract_strided_slice %30 {offsets = [4, 0, 0], sizes = [4, 16, 16], strides = [1, 1, 1]} : vector<8x16x16xf32> to vector<4x16x16xf32>
    %33 = vector.extract_strided_slice %19 {offsets = [16, 0, 0], sizes = [4, 16, 16], strides = [1, 1, 1]} : vector<20x16x16xf32> to vector<4x16x16xf32>
    %34 = arith.truncf %31 : vector<4x16x16xf32> to vector<4x16x16xbf16>
    %35 = arith.truncf %32 : vector<4x16x16xf32> to vector<4x16x16xbf16>
    "tpu.trace_start"() <{level = 10 : i32, message = "hqd,hkd->hqk"}> : () -> ()
    %cst_13 = arith.constant dense<0.000000e+00> : vector<4x16x16xf32>
    %36 = tpu.matmul %34, %35, %cst_13 {dimension_numbers = #tpu.dot_dimension_numbers<[2], [2], [1], [1], [0, 0, 0, 1, 1, 1], [0], [0]>} : vector<4x16x16xbf16>, vector<4x16x16xbf16>, vector<4x16x16xf32> -> vector<4x16x16xf32>
    "tpu.trace_stop"() : () -> ()
    %cst_14 = arith.constant 2.500000e-01 : f32
    %37 = vector.broadcast %cst_14 : f32 to vector<4x16x16xf32>
    %38 = arith.mulf %36, %37 : vector<4x16x16xf32>
    %39 = tpu.iota {dimensions = array<i32: 0>} : vector<16x16xi32>
    %40 = tpu.iota {dimensions = array<i32: 1>} : vector<16x16xi32>
    %41 = arith.cmpi sle, %40, %39 : vector<16x16xi32>
    %42 = vector.shape_cast %41 : vector<16x16xi1> to vector<1x16x16xi1>
    %cst_15 = arith.constant -1.000000e+30 : f32
    %43 = vector.shape_cast %42 : vector<1x16x16xi1> to vector<1x16x16xi1>
    %44 = vector.broadcast %43 : vector<1x16x16xi1> to vector<4x16x16xi1>
    %45 = vector.broadcast %cst_15 : f32 to vector<4x16x16xf32>
    %46 = arith.select %44, %38, %45 : vector<4x16x16xi1>, vector<4x16x16xf32>
    %cst_16 = arith.constant dense<0xFF800000> : vector<4x16xf32>
    %47 = vector.multi_reduction <maximumf>, %46, %cst_16 [2] : vector<4x16x16xf32> to vector<4x16xf32>
    %48 = vector.shape_cast %47 : vector<4x16xf32> to vector<4x16x1xf32>
    %49 = vector.broadcast %48 : vector<4x16x1xf32> to vector<4x16x16xf32>
    %50 = arith.subf %46, %49 : vector<4x16x16xf32>
    %51 = math.exp %50 : vector<4x16x16xf32>
    %cst_17 = arith.constant dense<0.000000e+00> : vector<4x16xf32>
    %52 = vector.multi_reduction <add>, %51, %cst_17 [2] : vector<4x16x16xf32> to vector<4x16xf32>
    %53 = vector.shape_cast %52 : vector<4x16xf32> to vector<4x16x1xf32>
    %54 = tpu.reciprocal %53 {approx = true} : vector<4x16x1xf32> -> vector<4x16x1xf32>
    %55 = vector.broadcast %54 : vector<4x16x1xf32> to vector<4x16x16xf32>
    %56 = arith.mulf %51, %55 : vector<4x16x16xf32>
    %57 = arith.truncf %56 : vector<4x16x16xf32> to vector<4x16x16xbf16>
    %58 = arith.truncf %33 : vector<4x16x16xf32> to vector<4x16x16xbf16>
    "tpu.trace_start"() <{level = 10 : i32, message = "hqk,hkd->hqd"}> : () -> ()
    %cst_18 = arith.constant dense<0.000000e+00> : vector<4x16x16xf32>
    %59 = tpu.matmul %57, %58, %cst_18 {dimension_numbers = #tpu.dot_dimension_numbers<[2], [1], [1], [2], [0, 0, 0, 1, 1, 2], [0], [0]>} : vector<4x16x16xbf16>, vector<4x16x16xbf16>, vector<4x16x16xf32> -> vector<4x16x16xf32>
    "tpu.trace_stop"() : () -> ()
    %60 = arith.truncf %59 : vector<4x16x16xf32> to vector<4x16x16xbf16>
    %c0_19 = arith.constant 0 : index
    %c0_20 = arith.constant 0 : index
    %c0_21 = arith.constant 0 : index
    %61 = vector.load %arg8[%c0_19, %c0_20, %c0_21] : memref<4x16x64xbf16, #tpu.memory_space<vmem>>, vector<4x16x64xbf16>
    %cst_22 = arith.constant dense<0.000000e+00> : vector<4x16x64xf32>
    %62 = tpu.matmul %60, %61, %cst_22 {dimension_numbers = #tpu.dot_dimension_numbers<[2], [1], [1], [2], [0, 0, 0, 1, 1, 2], [0], [0]>} : vector<4x16x16xbf16>, vector<4x16x64xbf16>, vector<4x16x64xf32> -> vector<4x16x64xf32>
    %cst_23 = arith.constant dense<0.000000e+00> : vector<16x64xf32>
    %63 = vector.multi_reduction <add>, %62, %cst_23 [0] : vector<4x16x64xf32> to vector<16x64xf32>
    %64 = arith.addf %63, %0 : vector<16x64xf32>
    %c0_24 = arith.constant 0 : index
    %c0_25 = arith.constant 0 : index
    %65 = vector.load %arg4[%c0_24, %c0_25] : memref<1x64xf32, #tpu.memory_space<vmem>>, vector<1x64xf32>
    %66 = arith.mulf %64, %64 : vector<16x64xf32>
    %cst_26 = arith.constant dense<0.000000e+00> : vector<16xf32>
    %67 = vector.multi_reduction <add>, %66, %cst_26 [1] : vector<16x64xf32> to vector<16xf32>
    %68 = vector.shape_cast %67 : vector<16xf32> to vector<16x1xf32>
    %cst_27 = arith.constant 6.400000e+01 : f32
    %69 = vector.broadcast %cst_27 : f32 to vector<16x1xf32>
    %70 = arith.divf %68, %69 : vector<16x1xf32>
    %cst_28 = arith.constant 9.99999974E-6 : f32
    %71 = vector.broadcast %cst_28 : f32 to vector<16x1xf32>
    %72 = arith.addf %70, %71 : vector<16x1xf32>
    %73 = math.rsqrt %72 : vector<16x1xf32>
    %74 = vector.broadcast %73 : vector<16x1xf32> to vector<16x64xf32>
    %75 = arith.mulf %64, %74 : vector<16x64xf32>
    %76 = vector.broadcast %65 : vector<1x64xf32> to vector<16x64xf32>
    %77 = arith.mulf %75, %76 : vector<16x64xf32>
    %78 = arith.truncf %77 : vector<16x64xf32> to vector<16x64xbf16>
    %c0_29 = arith.constant 0 : index
    %c0_30 = arith.constant 0 : index
    %79 = vector.load %arg9[%c0_29, %c0_30] : memref<64x256xbf16, #tpu.memory_space<vmem>>, vector<64x256xbf16>
    %cst_31 = arith.constant dense<0.000000e+00> : vector<16x256xf32>
    %80 = tpu.matmul %78, %79, %cst_31 {dimension_numbers = #tpu.dot_dimension_numbers<[1], [0], [0], [1], [0, 0, 1, 1], [], []>} : vector<16x64xbf16>, vector<64x256xbf16>, vector<16x256xf32> -> vector<16x256xf32>
    %81 = vector.extract_strided_slice %80 {offsets = [0, 0], sizes = [16, 128], strides = [1, 1]} : vector<16x256xf32> to vector<16x128xf32>
    %82 = vector.extract_strided_slice %80 {offsets = [0, 128], sizes = [16, 128], strides = [1, 1]} : vector<16x256xf32> to vector<16x128xf32>
    %83 = arith.negf %82 : vector<16x128xf32>
    %84 = math.exp %83 : vector<16x128xf32>
    %cst_32 = arith.constant 1.000000e+00 : f32
    %85 = vector.broadcast %cst_32 : f32 to vector<16x128xf32>
    %86 = arith.addf %85, %84 : vector<16x128xf32>
    %87 = arith.divf %85, %86 : vector<16x128xf32>
    %88 = arith.mulf %82, %87 : vector<16x128xf32>
    %89 = arith.mulf %81, %88 : vector<16x128xf32>
    %90 = arith.truncf %89 : vector<16x128xf32> to vector<16x128xbf16>
    %c0_33 = arith.constant 0 : index
    %c0_34 = arith.constant 0 : index
    %91 = vector.load %arg10[%c0_33, %c0_34] : memref<128x64xbf16, #tpu.memory_space<vmem>>, vector<128x64xbf16>
    %cst_35 = arith.constant dense<0.000000e+00> : vector<16x64xf32>
    %92 = tpu.matmul %90, %91, %cst_35 {dimension_numbers = #tpu.dot_dimension_numbers<[1], [0], [0], [1], [0, 0, 1, 1], [], []>} : vector<16x128xbf16>, vector<128x64xbf16>, vector<16x64xf32> -> vector<16x64xf32>
    %93 = tpu.concatenate %92, %64 in 1 : vector<16x64xf32>, vector<16x64xf32> -> vector<16x128xf32>
    %c0_36 = arith.constant 0 : index
    %c0_37 = arith.constant 0 : index
    %94 = vector.load %arg11[%c0_36, %c0_37] : memref<16x128xf32, #tpu.memory_space<vmem>>, vector<16x128xf32>
    tpu.vector_store %arg11[%c0_36, %c0_37], %93 {strides = array<i32>} : memref<16x128xf32, #tpu.memory_space<vmem>>, vector<16x128xf32>,
    return
  }
  func.func @transform_0(%arg0: i32) -> (i32, i32) {
    %c0_i32 = arith.constant 0 : i32
    %c0_i32_0 = arith.constant 0 : i32
    return %arg0, %c0_i32 : i32, i32
  }
  func.func @transform_1(%arg0: i32) -> (i32, i32) {
    %c0_i32 = arith.constant 0 : i32
    %c0_i32_0 = arith.constant 0 : i32
    %c0_i32_1 = arith.constant 0 : i32
    return %c0_i32, %c0_i32_0 : i32, i32
  }
  func.func @transform_2(%arg0: i32) -> (i32, i32) {
    %c0_i32 = arith.constant 0 : i32
    %c0_i32_0 = arith.constant 0 : i32
    %c0_i32_1 = arith.constant 0 : i32
    return %c0_i32, %c0_i32_0 : i32, i32
  }
  func.func @transform_3(%arg0: i32) -> (i32, i32) {
    %c0_i32 = arith.constant 0 : i32
    %c0_i32_0 = arith.constant 0 : i32
    %c0_i32_1 = arith.constant 0 : i32
    return %c0_i32, %c0_i32_0 : i32, i32
  }
  func.func @transform_4(%arg0: i32) -> (i32, i32) {
    %c0_i32 = arith.constant 0 : i32
    %c0_i32_0 = arith.constant 0 : i32
    %c0_i32_1 = arith.constant 0 : i32
    return %c0_i32, %c0_i32_0 : i32, i32
  }
  func.func @transform_5(%arg0: i32) -> (i32, i32) {
    %c0_i32 = arith.constant 0 : i32
    %c0_i32_0 = arith.constant 0 : i32
    %c0_i32_1 = arith.constant 0 : i32
    return %c0_i32, %c0_i32_0 : i32, i32
  }
  func.func @transform_6(%arg0: i32) -> (i32, i32, i32) {
    %c0_i32 = arith.constant 0 : i32
    %c0_i32_0 = arith.constant 0 : i32
    %c0_i32_1 = arith.constant 0 : i32
    %c0_i32_2 = arith.constant 0 : i32
    return %c0_i32, %c0_i32_0, %c0_i32_1 : i32, i32, i32
  }
  func.func @transform_7(%arg0: i32) -> (i32, i32, i32) {
    %c0_i32 = arith.constant 0 : i32
    %c0_i32_0 = arith.constant 0 : i32
    %c0_i32_1 = arith.constant 0 : i32
    %c0_i32_2 = arith.constant 0 : i32
    return %c0_i32, %c0_i32_0, %c0_i32_1 : i32, i32, i32
  }
  func.func @transform_8(%arg0: i32) -> (i32, i32) {
    %c0_i32 = arith.constant 0 : i32
    %c0_i32_0 = arith.constant 0 : i32
    %c0_i32_1 = arith.constant 0 : i32
    return %c0_i32, %c0_i32_0 : i32, i32
  }
  func.func @transform_9(%arg0: i32) -> (i32, i32) {
    %c0_i32 = arith.constant 0 : i32
    %c0_i32_0 = arith.constant 0 : i32
    %c0_i32_1 = arith.constant 0 : i32
    return %c0_i32, %c0_i32_0 : i32, i32
  }
  func.func @transform_10(%arg0: i32) -> (i32, i32) {
    %c0_i32 = arith.constant 0 : i32
    %c0_i32_0 = arith.constant 0 : i32
    return %arg0, %c0_i32 : i32, i32
  }
}

</mosaic_0001>

<llo_original>
// kernel: tpu_custom_call.1
$region0: #{tpu_custom_call.1}
  #allocation0 [shape = 'u32[]', space=smem, size = 0x4, offset = 0x4, fixed_abs, tag = 'smem constant byte address 0x4 - core index']
  #allocation1 [shape = 'u32[144,128]{1,0:T(1,128)}', space=vmem, size = 0x12000, scoped, tag = 'internal scratch']
  %s0 = inlined_call_operand.vmem [shape: f32[32,64], index: 0, kind: input, shape index: {}]
  %s1 = inlined_call_operand.vmem [shape: s32[16,1], index: 1, kind: input, shape index: {}]
  %s2 = inlined_call_operand.vmem [shape: f32[1,64], index: 2, kind: input, shape index: {}]
  %s3 = inlined_call_operand.vmem [shape: f32[1,64], index: 3, kind: input, shape index: {}]
  %s4 = inlined_call_operand.vmem [shape: f32[16,16], index: 4, kind: input, shape index: {}]
  %s5 = inlined_call_operand.vmem [shape: f32[16,16], index: 5, kind: input, shape index: {}]
  %s6 = inlined_call_operand.vmem [shape: bf16[20,64,16], index: 6, kind: input, shape index: {}]
  %s7 = inlined_call_operand.vmem [shape: bf16[4,16,64], index: 7, kind: input, shape index: {}]
  %s8 = inlined_call_operand.vmem [shape: bf16[64,256], index: 8, kind: input, shape index: {}]
  %s9 = inlined_call_operand.vmem [shape: bf16[128,64], index: 9, kind: input, shape index: {}]
  %s10 = inlined_call_operand.hbm [shape: f32[32,128], index: 10, kind: output, shape index: {}]
  %s11 = sld [smem:[#allocation0]]
  $region73: #{tpu_custom_call.1} parent=0
    _
  %s13 = ssub.s32 1, %s11
  %s14 = scalar_select 0, %s13, %s11
  $region1: #{tpu_custom_call.1} parent=0
    #allocation2 [shape = 'u8[16384]{0}', space=vmem, size = 0x4000, scoped, tag = 'output window, operand 0']
    #allocation3 [shape = 's32[2]{0}', space=sflag, size = 0x8, scoped, tag = 'scoped memory for tpu_custom_call.1']
    %15 = vsyncpa [#allocation3], 0
    %s16 = scalar_lea.sflag [#allocation3], 1
    %17 = vsyncpa %s16, 0
    loop: start=0, step=1, limit=4
    $region2: #{tpu_custom_call.1} parent=1 // loop_pre_header
      _
    $region3: #{tpu_custom_call.1} parent=1 // loop_header
      %s19 = sphi 0, %s23
      %p20 = scmp.ge.s32.totalorder %s19, 4
      %s29 = sphi 0, %s31
      %s32 = sphi 0, %s29
      %s33 = sphi 0, %s32
      %s49 = sphi 0, %s33
      %s53 = sphi 0, %s53
      %s55 = sphi 0, %s53
      %s56 = sphi 0, %s55
      %s70 = sphi 0, %s56
      %s74 = sphi 0, %s74
      %s76 = sphi 0, %s74
      %s77 = sphi 0, %s76
      %s91 = sphi 0, %s77
      %s95 = sphi 0, %s95
      %s97 = sphi 0, %s95
      %s98 = sphi 0, %s97
      %s112 = sphi 0, %s98
      %s116 = sphi 0, %s116
      %s118 = sphi 0, %s116
      %s119 = sphi 0, %s118
      %s133 = sphi 0, %s119
      %s137 = sphi 0, %s137
      %s139 = sphi 0, %s137
      %s140 = sphi 0, %s139
      %s154 = sphi 0, %s140
      %s158 = sphi 0, %s158
      %s160 = sphi 0, %s158
      %s161 = sphi 0, %s160
      %s175 = sphi 0, %s161
      %s179 = sphi 0, %s179
      %s181 = sphi 0, %s179
      %s182 = sphi 0, %s181
      %s196 = sphi 0, %s182
      %s200 = sphi 0, %s200
      %s202 = sphi 0, %s200
      %s203 = sphi 0, %s202
      %s217 = sphi 0, %s203
      %s221 = sphi 0, %s221
      %s223 = sphi 0, %s221
      %s224 = sphi 0, %s223
      %s238 = sphi 0, %s224
      %s244 = sphi 0, %s246
      %s247 = sphi 0, %s244
      %s248 = sphi 0, %s247
      %s264 = sphi 0, %s248
    $region4: #{tpu_custom_call.1} parent=1 // loop_header_branch
      %22 = sbr.rel (%p20) target = $region8
    $region5: #{tpu_custom_call.1} parent=1 // loop_body
      %s24 = ssub.s32 %s19, 1
      %s25 = ssub.s32 %s19, 2
      %s26 = sadd.s32 %s19, 1
      %s27 = ssub.s32 %s19, %s26
      %p28 = scmp.eq.s32.totalorder %s27, 0
      %s30 = sadd.s32 %s29, 1
      %s31 = scalar_select %p28, %s29, %s30
      %p34 = pneg %p28
      %p35 = scmp.eq.s32.totalorder %s19, 1
      %p36 = por %p34, %p35
      %p37 = scmp.ne.s32.totalorder %s29, %s32
      %p38 = scmp.eq.s32.totalorder %s19, 0
      %p39 = por %p37, %p38
      %p40 = scmp.ne.s32.totalorder %s29, %s32
      %p41 = scmp.eq.s32.totalorder %s24, 1
      %p42 = por %p40, %p41
      %p43 = scmp.ne.s32.totalorder %s32, %s33
      %p44 = scmp.eq.s32.totalorder %s24, 0
      %p45 = por %p43, %p44
      %p46 = scmp.ne.s32.totalorder %s32, %s33
      %p47 = scmp.eq.s32.totalorder %s25, 1
      %p48 = por %p46, %p47
      %p50 = scmp.ne.s32.totalorder %s33, %s49
      %p51 = scmp.eq.s32.totalorder %s25, 0
      %p52 = por %p50, %p51
      %s54 = sadd.s32 %s53, 1
      %p57 = scmp.eq.s32.totalorder %s19, 1
      %p58 = scmp.ne.s32.totalorder %s53, %s55
      %p59 = scmp.eq.s32.totalorder %s19, 0
      %p60 = por %p58, %p59
      %p61 = scmp.ne.s32.totalorder %s53, %s55
      %p62 = scmp.eq.s32.totalorder %s24, 1
      %p63 = por %p61, %p62
      %p64 = scmp.ne.s32.totalorder %s55, %s56
      %p65 = scmp.eq.s32.totalorder %s24, 0
      %p66 = por %p64, %p65
      %p67 = scmp.ne.s32.totalorder %s55, %s56
      %p68 = scmp.eq.s32.totalorder %s25, 1
      %p69 = por %p67, %p68
      %p71 = scmp.ne.s32.totalorder %s56, %s70
      %p72 = scmp.eq.s32.totalorder %s25, 0
      %p73 = por %p71, %p72
      %s75 = sadd.s32 %s74, 1
      %p78 = scmp.eq.s32.totalorder %s19, 1
      %p79 = scmp.ne.s32.totalorder %s74, %s76
      %p80 = scmp.eq.s32.totalorder %s19, 0
      %p81 = por %p79, %p80
      %p82 = scmp.ne.s32.totalorder %s74, %s76
      %p83 = scmp.eq.s32.totalorder %s24, 1
      %p84 = por %p82, %p83
      %p85 = scmp.ne.s32.totalorder %s76, %s77
      %p86 = scmp.eq.s32.totalorder %s24, 0
      %p87 = por %p85, %p86
      %p88 = scmp.ne.s32.totalorder %s76, %s77
      %p89 = scmp.eq.s32.totalorder %s25, 1
      %p90 = por %p88, %p89
      %p92 = scmp.ne.s32.totalorder %s77, %s91
      %p93 = scmp.eq.s32.totalorder %s25, 0
      %p94 = por %p92, %p93
      %s96 = sadd.s32 %s95, 1
      %p99 = scmp.eq.s32.totalorder %s19, 1
      %p100 = scmp.ne.s32.totalorder %s95, %s97
      %p101 = scmp.eq.s32.totalorder %s19, 0
      %p102 = por %p100, %p101
      %p103 = scmp.ne.s32.totalorder %s95, %s97
      %p104 = scmp.eq.s32.totalorder %s24, 1
      %p105 = por %p103, %p104
      %p106 = scmp.ne.s32.totalorder %s97, %s98
      %p107 = scmp.eq.s32.totalorder %s24, 0
      %p108 = por %p106, %p107
      %p109 = scmp.ne.s32.totalorder %s97, %s98
      %p110 = scmp.eq.s32.totalorder %s25, 1
      %p111 = por %p109, %p110
      %p113 = scmp.ne.s32.totalorder %s98, %s112
      %p114 = scmp.eq.s32.totalorder %s25, 0
      %p115 = por %p113, %p114
      %s117 = sadd.s32 %s116, 1
      %p120 = scmp.eq.s32.totalorder %s19, 1
      %p121 = scmp.ne.s32.totalorder %s116, %s118
      %p122 = scmp.eq.s32.totalorder %s19, 0
      %p123 = por %p121, %p122
      %p124 = scmp.ne.s32.totalorder %s116, %s118
      %p125 = scmp.eq.s32.totalorder %s24, 1
      %p126 = por %p124, %p125
      %p127 = scmp.ne.s32.totalorder %s118, %s119
      %p128 = scmp.eq.s32.totalorder %s24, 0
      %p129 = por %p127, %p128
      %p130 = scmp.ne.s32.totalorder %s118, %s119
      %p131 = scmp.eq.s32.totalorder %s25, 1
      %p132 = por %p130, %p131
      %p134 = scmp.ne.s32.totalorder %s119, %s133
      %p135 = scmp.eq.s32.totalorder %s25, 0
      %p136 = por %p134, %p135
      %s138 = sadd.s32 %s137, 1
      %p141 = scmp.eq.s32.totalorder %s19, 1
      %p142 = scmp.ne.s32.totalorder %s137, %s139
      %p143 = scmp.eq.s32.totalorder %s19, 0
      %p144 = por %p142, %p143
      %p145 = scmp.ne.s32.totalorder %s137, %s139
      %p146 = scmp.eq.s32.totalorder %s24, 1
      %p147 = por %p145, %p146
      %p148 = scmp.ne.s32.totalorder %s139, %s140
      %p149 = scmp.eq.s32.totalorder %s24, 0
      %p150 = por %p148, %p149
      %p151 = scmp.ne.s32.totalorder %s139, %s140
      %p152 = scmp.eq.s32.totalorder %s25, 1
      %p153 = por %p151, %p152
      %p155 = scmp.ne.s32.totalorder %s140, %s154
      %p156 = scmp.eq.s32.totalorder %s25, 0
      %p157 = por %p155, %p156
      %s159 = sadd.s32 %s158, 1
      %p162 = scmp.eq.s32.totalorder %s19, 1
      %p163 = scmp.ne.s32.totalorder %s158, %s160
      %p164 = scmp.eq.s32.totalorder %s19, 0
      %p165 = por %p163, %p164
      %p166 = scmp.ne.s32.totalorder %s158, %s160
      %p167 = scmp.eq.s32.totalorder %s24, 1
      %p168 = por %p166, %p167
      %p169 = scmp.ne.s32.totalorder %s160, %s161
      %p170 = scmp.eq.s32.totalorder %s24, 0
      %p171 = por %p169, %p170
      %p172 = scmp.ne.s32.totalorder %s160, %s161
      %p173 = scmp.eq.s32.totalorder %s25, 1
      %p174 = por %p172, %p173
      %p176 = scmp.ne.s32.totalorder %s161, %s175
      %p177 = scmp.eq.s32.totalorder %s25, 0
      %p178 = por %p176, %p177
      %s180 = sadd.s32 %s179, 1
      %p183 = scmp.eq.s32.totalorder %s19, 1
      %p184 = scmp.ne.s32.totalorder %s179, %s181
      %p185 = scmp.eq.s32.totalorder %s19, 0
      %p186 = por %p184, %p185
      %p187 = scmp.ne.s32.totalorder %s179, %s181
      %p188 = scmp.eq.s32.totalorder %s24, 1
      %p189 = por %p187, %p188
      %p190 = scmp.ne.s32.totalorder %s181, %s182
      %p191 = scmp.eq.s32.totalorder %s24, 0
      %p192 = por %p190, %p191
      %p193 = scmp.ne.s32.totalorder %s181, %s182
      %p194 = scmp.eq.s32.totalorder %s25, 1
      %p195 = por %p193, %p194
      %p197 = scmp.ne.s32.totalorder %s182, %s196
      %p198 = scmp.eq.s32.totalorder %s25, 0
      %p199 = por %p197, %p198
      %s201 = sadd.s32 %s200, 1
      %p204 = scmp.eq.s32.totalorder %s19, 1
      %p205 = scmp.ne.s32.totalorder %s200, %s202
      %p206 = scmp.eq.s32.totalorder %s19, 0
      %p207 = por %p205, %p206
      %p208 = scmp.ne.s32.totalorder %s200, %s202
      %p209 = scmp.eq.s32.totalorder %s24, 1
      %p210 = por %p208, %p209
      %p211 = scmp.ne.s32.totalorder %s202, %s203
      %p212 = scmp.eq.s32.totalorder %s24, 0
      %p213 = por %p211, %p212
      %p214 = scmp.ne.s32.totalorder %s202, %s203
      %p215 = scmp.eq.s32.totalorder %s25, 1
      %p216 = por %p214, %p215
      %p218 = scmp.ne.s32.totalorder %s203, %s217
      %p219 = scmp.eq.s32.totalorder %s25, 0
      %p220 = por %p218, %p219
      %s222 = sadd.s32 %s221, 1
      %p225 = scmp.eq.s32.totalorder %s19, 1
      %p226 = scmp.ne.s32.totalorder %s221, %s223
      %p227 = scmp.eq.s32.totalorder %s19, 0
      %p228 = por %p226, %p227
      %p229 = scmp.ne.s32.totalorder %s221, %s223
      %p230 = scmp.eq.s32.totalorder %s24, 1
      %p231 = por %p229, %p230
      %p232 = scmp.ne.s32.totalorder %s223, %s224
      %p233 = scmp.eq.s32.totalorder %s24, 0
      %p234 = por %p232, %p233
      %p235 = scmp.ne.s32.totalorder %s223, %s224
      %p236 = scmp.eq.s32.totalorder %s25, 1
      %p237 = por %p235, %p236
      %p239 = scmp.ne.s32.totalorder %s224, %s238
      %p240 = scmp.eq.s32.totalorder %s25, 0
      %p241 = por %p239, %p240
      %s242 = ssub.s32 %s19, %s26
      %p243 = scmp.eq.s32.totalorder %s242, 0
      %s245 = sadd.s32 %s244, 1
      %s246 = scalar_select %p243, %s244, %s245
      %p249 = pneg %p243
      %p250 = scmp.eq.s32.totalorder %s19, 1
      %p251 = por %p249, %p250
      %p252 = scmp.ne.s32.totalorder %s244, %s247
      %p253 = scmp.eq.s32.totalorder %s19, 0
      %p254 = por %p252, %p253
      %p255 = scmp.ne.s32.totalorder %s244, %s247
      %p256 = scmp.eq.s32.totalorder %s24, 1
      %p257 = por %p255, %p256
      %p258 = scmp.ne.s32.totalorder %s247, %s248
      %p259 = scmp.eq.s32.totalorder %s24, 0
      %p260 = por %p258, %p259
      %p261 = scmp.ne.s32.totalorder %s247, %s248
      %p262 = scmp.eq.s32.totalorder %s25, 1
      %p263 = por %p261, %p262
      %p265 = scmp.ne.s32.totalorder %s248, %s264
      %p266 = scmp.eq.s32.totalorder %s25, 0
      %p267 = por %p265, %p266
      %p268 = scmp.le.s32.totalorder 1, %s19
      %p269 = scmp.lt.s32.totalorder %s19, 3
      %p270 = pnand %p268, %p269
      %p271 = pneg %p270
      // Predicated region
      $region9: #{tpu_custom_call.1} parent=5 // pred_check
        _
      $region10: #{tpu_custom_call.1} parent=5 // pred_check_branch
        %273 = sbr.rel (%p270) target = $region12
      $region11: #{tpu_custom_call.1} parent=5 // pred_region
        %s274 = ssub.s32 %s19, 1
        // Predicated region
        $region13: #{tpu_custom_call.1} parent=11 // pred_check
          %p275 = pneg %p66
        $region14: #{tpu_custom_call.1} parent=11 // pred_check_branch
          %277 = sbr.rel (%p275) target = $region16
        $region15: #{tpu_custom_call.1} parent=11 // pred_region
          _
        $region16: #{tpu_custom_call.1} parent=11 // pred_fallthru
          _
        // Predicated region
        $region17: #{tpu_custom_call.1} parent=11 // pred_check
          %p278 = pneg %p87
        $region18: #{tpu_custom_call.1} parent=11 // pred_check_branch
          %280 = sbr.rel (%p278) target = $region20
        $region19: #{tpu_custom_call.1} parent=11 // pred_region
          _
        $region20: #{tpu_custom_call.1} parent=11 // pred_fallthru
          _
        // Predicated region
        $region21: #{tpu_custom_call.1} parent=11 // pred_check
          %p281 = pneg %p108
        $region22: #{tpu_custom_call.1} parent=11 // pred_check_branch
          %283 = sbr.rel (%p281) target = $region24
        $region23: #{tpu_custom_call.1} parent=11 // pred_region
          _
        $region24: #{tpu_custom_call.1} parent=11 // pred_fallthru
          _
        // Predicated region
        $region25: #{tpu_custom_call.1} parent=11 // pred_check
          %p284 = pneg %p129
        $region26: #{tpu_custom_call.1} parent=11 // pred_check_branch
          %286 = sbr.rel (%p284) target = $region28
        $region27: #{tpu_custom_call.1} parent=11 // pred_region
          _
        $region28: #{tpu_custom_call.1} parent=11 // pred_fallthru
          _
        // Predicated region
        $region29: #{tpu_custom_call.1} parent=11 // pred_check
          %p287 = pneg %p150
        $region30: #{tpu_custom_call.1} parent=11 // pred_check_branch
          %289 = sbr.rel (%p287) target = $region32
        $region31: #{tpu_custom_call.1} parent=11 // pred_region
          _
        $region32: #{tpu_custom_call.1} parent=11 // pred_fallthru
          _
        // Predicated region
        $region33: #{tpu_custom_call.1} parent=11 // pred_check
          %p290 = pneg %p171
        $region34: #{tpu_custom_call.1} parent=11 // pred_check_branch
          %292 = sbr.rel (%p290) target = $region36
        $region35: #{tpu_custom_call.1} parent=11 // pred_region
          _
        $region36: #{tpu_custom_call.1} parent=11 // pred_fallthru
          _
        // Predicated region
        $region37: #{tpu_custom_call.1} parent=11 // pred_check
          %p293 = pneg %p192
        $region38: #{tpu_custom_call.1} parent=11 // pred_check_branch
          %295 = sbr.rel (%p293) target = $region40
        $region39: #{tpu_custom_call.1} parent=11 // pred_region
          _
        $region40: #{tpu_custom_call.1} parent=11 // pred_fallthru
          _
        // Predicated region
        $region41: #{tpu_custom_call.1} parent=11 // pred_check
          %p296 = pneg %p213
        $region42: #{tpu_custom_call.1} parent=11 // pred_check_branch
          %298 = sbr.rel (%p296) target = $region44
        $region43: #{tpu_custom_call.1} parent=11 // pred_region
          _
        $region44: #{tpu_custom_call.1} parent=11 // pred_fallthru
          _
        // Predicated region
        $region45: #{tpu_custom_call.1} parent=11 // pred_check
          %p299 = pneg %p234
        $region46: #{tpu_custom_call.1} parent=11 // pred_check_branch
          %301 = sbr.rel (%p299) target = $region48
        $region47: #{tpu_custom_call.1} parent=11 // pred_region
          _
        $region48: #{tpu_custom_call.1} parent=11 // pred_fallthru
          _
      $region12: #{tpu_custom_call.1} parent=5 // pred_fallthru
        _
      %p302 = scmp.lt.s32.totalorder %s19, 2
      // Predicated region
      $region49: #{tpu_custom_call.1} parent=5 // pred_check
        %p303 = pneg %p302
      $region50: #{tpu_custom_call.1} parent=5 // pred_check_branch
        %305 = sbr.rel (%p303) target = $region52
      $region51: #{tpu_custom_call.1} parent=5 // pred_region
        // Predicated region
        $region53: #{tpu_custom_call.1} parent=51 // pred_check
          %p306 = pneg %p39
        $region54: #{tpu_custom_call.1} parent=51 // pred_check_branch
          %308 = sbr.rel (%p306) target = $region56
        $region55: #{tpu_custom_call.1} parent=51 // pred_region
          %s309 = smul.u32 2, %s19
          %p310 = scmp.lt.s32.totalorder %s309, 3
          %s311 = scalar_select %p310, %s309, 3
          %s312 = smul.addr %s311, 8
          %s313 = scalar_lea.vmem %s0, %s312
          %s314 = smul.u32 2, %s19
        $region56: #{tpu_custom_call.1} parent=51 // pred_fallthru
          _
      $region52: #{tpu_custom_call.1} parent=5 // pred_fallthru
        _
      %p315 = scmp.le.s32.totalorder 1, %s19
      %p316 = scmp.lt.s32.totalorder %s19, 3
      %p317 = pnand %p315, %p316
      %p318 = pneg %p317
      // Predicated region
      $region57: #{tpu_custom_call.1} parent=5 // pred_check
        _
      $region58: #{tpu_custom_call.1} parent=5 // pred_check_branch
        %320 = sbr.rel (%p317) target = $region60
      $region59: #{tpu_custom_call.1} parent=5 // pred_region
        %s321 = ssub.s32 %s19, 1
        %s322 = smul.u32 2, %s24
        %p323 = scmp.lt.s32.totalorder %s322, 3
        %s324 = scalar_select %p323, %s322, 3
        %s325 = smul.addr %s324, 8
        %s326 = scalar_lea.vmem %s0, %s325
        %p327 = pneg %p45
        %p328 = pneg %p42
        %p329 = pneg %p66
        %p330 = pneg %p63
        %p331 = pneg %p87
        %p332 = pneg %p84
        %p333 = pneg %p108
        %p334 = pneg %p105
        %p335 = pneg %p129
        %p336 = pneg %p126
        %p337 = pneg %p150
        %p338 = pneg %p147
        %p339 = pneg %p171
        %p340 = pneg %p168
        %p341 = pneg %p192
        %p342 = pneg %p189
        %p343 = pneg %p213
        %p344 = pneg %p210
        %p345 = pneg %p234
        %p346 = pneg %p231
        %p347 = pneg %p260
        %p348 = pneg %p257
        %s349 = sand.u32 %s247, 1
        %s350 = scalar_lea.sflag [#allocation3], %s349
        %s351 = sand.u32 %s247, 1
        %s352 = smul.addr %s351, 16
        %s353 = scalar_lea.vmem [#allocation2], %s352
        %s354 = smul.u32 2, %s24
        %p355 = scmp.lt.s32.totalorder %s354, 3
        %s356 = scalar_select %p355, %s354, 3
        %s357 = smul.addr %s356, 8
        %s358 = scalar_lea.vmem %s0, %s357
        %s359 = smul.u32 2, %s24
        %s360 = smul.u32 2, %s24
        %v362 = vld [vmem:[%s358] sm:$0xff]
        %v363 = vld [vmem:[%s358 + $0x8] sm:$0xff]
        %v364 = vld [vmem:[%s2] sm:$0x1]
        %v365 = vmul.f32 %v362, %v362
        %v366 = vmul.f32 %v363, %v363
        %vm367 = vcmask 523264
        %v368 = vsel %vm367, %v365, 0.0
        %369 = vadd.xlane.f32.xlu0 %v368
        %v370 = vpop.xlane.xlu0 %369
        %v371 = vsel %vm367, %v366, 0.0
        %372 = vadd.xlane.f32.xlu0 %v371
        %v373 = vpop.xlane.xlu0 %372
        %v374 = vrcp.pop 64.0
        %v375 = vmul.f32 %v370, %v374
        %v376 = vmul.f32 %v373, %v374
        %v377 = vadd.f32 %v375, 1e-05
        %v378 = vadd.f32 %v376, 1e-05
        %v379 = vrsqrt.pop %v377
        %v380 = vrsqrt.pop %v378
        %v381 = vmul.f32 %v362, %v379
        %v382 = vmul.f32 %v363, %v380
        %v384 = vlaneseq
        %v385 = vshrl.u32 %v384, 7
        %v386 = vsub.s32 0, %v385
        %v387 = vrot.slane %v364, %v386
        %v389 = vmul.f32 %v381, %v387
        %v390 = vmul.f32 %v382, %v387
        %v391 = vpack.c.bf16 %v390, %v389
        %v392 = vld [vmem:[%s6] sm:$0xf]
        %v393 = vld [vmem:[%s6 + $0x4] sm:$0xf]
        %v394 = vld [vmem:[%s6 + $0x8] sm:$0xf]
        %v395 = vld [vmem:[%s6 + $0xc] sm:$0xf]
        %v396 = vld [vmem:[%s6 + $0x10] sm:$0xf]
        %v397 = vld [vmem:[%s6 + $0x14] sm:$0xf]
        %v398 = vld [vmem:[%s6 + $0x18] sm:$0xf]
        %v399 = vld [vmem:[%s6 + $0x1c] sm:$0xf]
        %v400 = vld [vmem:[%s6 + $0x20] sm:$0xf]
        %v401 = vld [vmem:[%s6 + $0x24] sm:$0xf]
        %v402 = vld [vmem:[%s6 + $0x28] sm:$0xf]
        %v403 = vld [vmem:[%s6 + $0x2c] sm:$0xf]
        %v404 = vld [vmem:[%s6 + $0x30] sm:$0xf]
        %v405 = vld [vmem:[%s6 + $0x34] sm:$0xf]
        %v406 = vld [vmem:[%s6 + $0x38] sm:$0xf]
        %v407 = vld [vmem:[%s6 + $0x3c] sm:$0xf]
        %v408 = vld [vmem:[%s6 + $0x40] sm:$0xf]
        %v409 = vld [vmem:[%s6 + $0x44] sm:$0xf]
        %v410 = vld [vmem:[%s6 + $0x48] sm:$0xf]
        %v411 = vld [vmem:[%s6 + $0x4c] sm:$0xf]
        %v412 = vld [vmem:[%s6 + $0x50] sm:$0xf]
        %v413 = vld [vmem:[%s6 + $0x54] sm:$0xf]
        %v414 = vld [vmem:[%s6 + $0x58] sm:$0xf]
        %v415 = vld [vmem:[%s6 + $0x5c] sm:$0xf]
        %v416 = vld [vmem:[%s6 + $0x60] sm:$0xf]
        %v417 = vld [vmem:[%s6 + $0x64] sm:$0xf]
        %v418 = vld [vmem:[%s6 + $0x68] sm:$0xf]
        %v419 = vld [vmem:[%s6 + $0x6c] sm:$0xf]
        %v420 = vld [vmem:[%s6 + $0x70] sm:$0xf]
        %v421 = vld [vmem:[%s6 + $0x74] sm:$0xf]
        %v422 = vld [vmem:[%s6 + $0x78] sm:$0xf]
        %v423 = vld [vmem:[%s6 + $0x7c] sm:$0xf]
        %v424 = vld [vmem:[%s6 + $0x80] sm:$0xf]
        %v425 = vld [vmem:[%s6 + $0x84] sm:$0xf]
        %v426 = vld [vmem:[%s6 + $0x88] sm:$0xf]
        %v427 = vld [vmem:[%s6 + $0x8c] sm:$0xf]
        %v428 = vld [vmem:[%s6 + $0x90] sm:$0xf]
        %v429 = vld [vmem:[%s6 + $0x94] sm:$0xf]
        %v430 = vld [vmem:[%s6 + $0x98] sm:$0xf]
        %v431 = vld [vmem:[%s6 + $0x9c] sm:$0xf]
        %v432 = vld [vmem:[%s6 + $0xa0] sm:$0xf]
        %v433 = vld [vmem:[%s6 + $0xa4] sm:$0xf]
        %v434 = vld [vmem:[%s6 + $0xa8] sm:$0xf]
        %v435 = vld [vmem:[%s6 + $0xac] sm:$0xf]
        %v436 = vld [vmem:[%s6 + $0xb0] sm:$0xf]
        %v437 = vld [vmem:[%s6 + $0xb4] sm:$0xf]
        %v438 = vld [vmem:[%s6 + $0xb8] sm:$0xf]
        %v439 = vld [vmem:[%s6 + $0xbc] sm:$0xf]
        %v440 = vld [vmem:[%s6 + $0xc0] sm:$0xf]
        %v441 = vld [vmem:[%s6 + $0xc4] sm:$0xf]
        %v442 = vld [vmem:[%s6 + $0xc8] sm:$0xf]
        %v443 = vld [vmem:[%s6 + $0xcc] sm:$0xf]
        %v444 = vld [vmem:[%s6 + $0xd0] sm:$0xf]
        %v445 = vld [vmem:[%s6 + $0xd4] sm:$0xf]
        %v446 = vld [vmem:[%s6 + $0xd8] sm:$0xf]
        %v447 = vld [vmem:[%s6 + $0xdc] sm:$0xf]
        %v448 = vld [vmem:[%s6 + $0xe0] sm:$0xf]
        %v449 = vld [vmem:[%s6 + $0xe4] sm:$0xf]
        %v450 = vld [vmem:[%s6 + $0xe8] sm:$0xf]
        %v451 = vld [vmem:[%s6 + $0xec] sm:$0xf]
        %v452 = vld [vmem:[%s6 + $0xf0] sm:$0xf]
        %v453 = vld [vmem:[%s6 + $0xf4] sm:$0xf]
        %v454 = vld [vmem:[%s6 + $0xf8] sm:$0xf]
        %v455 = vld [vmem:[%s6 + $0xfc] sm:$0xf]
        %v456 = vld [vmem:[%s6 + $0x100] sm:$0xf]
        %v457 = vld [vmem:[%s6 + $0x104] sm:$0xf]
        %v458 = vld [vmem:[%s6 + $0x108] sm:$0xf]
        %v459 = vld [vmem:[%s6 + $0x10c] sm:$0xf]
        %v460 = vld [vmem:[%s6 + $0x110] sm:$0xf]
        %v461 = vld [vmem:[%s6 + $0x114] sm:$0xf]
        %v462 = vld [vmem:[%s6 + $0x118] sm:$0xf]
        %v463 = vld [vmem:[%s6 + $0x11c] sm:$0xf]
        %v464 = vld [vmem:[%s6 + $0x120] sm:$0xf]
        %v465 = vld [vmem:[%s6 + $0x124] sm:$0xf]
        %v466 = vld [vmem:[%s6 + $0x128] sm:$0xf]
        %v467 = vld [vmem:[%s6 + $0x12c] sm:$0xf]
        %v468 = vld [vmem:[%s6 + $0x130] sm:$0xf]
        %v469 = vld [vmem:[%s6 + $0x134] sm:$0xf]
        %v470 = vld [vmem:[%s6 + $0x138] sm:$0xf]
        %v471 = vld [vmem:[%s6 + $0x13c] sm:$0xf]
        %v472 = vld [vmem:[%s6 + $0x140] sm:$0xf]
        %v473 = vld [vmem:[%s6 + $0x144] sm:$0xf]
        %v474 = vld [vmem:[%s6 + $0x148] sm:$0xf]
        %v475 = vld [vmem:[%s6 + $0x14c] sm:$0xf]
        %v476 = vld [vmem:[%s6 + $0x150] sm:$0xf]
        %v477 = vld [vmem:[%s6 + $0x154] sm:$0xf]
        %v478 = vld [vmem:[%s6 + $0x158] sm:$0xf]
        %v479 = vld [vmem:[%s6 + $0x15c] sm:$0xf]
        %v480 = vld [vmem:[%s6 + $0x160] sm:$0xf]
        %v481 = vld [vmem:[%s6 + $0x164] sm:$0xf]
        %v482 = vld [vmem:[%s6 + $0x168] sm:$0xf]
        %v483 = vld [vmem:[%s6 + $0x16c] sm:$0xf]
        %v484 = vld [vmem:[%s6 + $0x170] sm:$0xf]
        %v485 = vld [vmem:[%s6 + $0x174] sm:$0xf]
        %v486 = vld [vmem:[%s6 + $0x178] sm:$0xf]
        %v487 = vld [vmem:[%s6 + $0x17c] sm:$0xf]
        %v488 = vld [vmem:[%s6 + $0x180] sm:$0xf]
        %v489 = vld [vmem:[%s6 + $0x184] sm:$0xf]
        %v490 = vld [vmem:[%s6 + $0x188] sm:$0xf]
        %v491 = vld [vmem:[%s6 + $0x18c] sm:$0xf]
        %v492 = vld [vmem:[%s6 + $0x190] sm:$0xf]
        %v493 = vld [vmem:[%s6 + $0x194] sm:$0xf]
        %v494 = vld [vmem:[%s6 + $0x198] sm:$0xf]
        %v495 = vld [vmem:[%s6 + $0x19c] sm:$0xf]
        %v496 = vld [vmem:[%s6 + $0x1a0] sm:$0xf]
        %v497 = vld [vmem:[%s6 + $0x1a4] sm:$0xf]
        %v498 = vld [vmem:[%s6 + $0x1a8] sm:$0xf]
        %v499 = vld [vmem:[%s6 + $0x1ac] sm:$0xf]
        %v500 = vld [vmem:[%s6 + $0x1b0] sm:$0xf]
        %v501 = vld [vmem:[%s6 + $0x1b4] sm:$0xf]
        %v502 = vld [vmem:[%s6 + $0x1b8] sm:$0xf]
        %v503 = vld [vmem:[%s6 + $0x1bc] sm:$0xf]
        %v504 = vld [vmem:[%s6 + $0x1c0] sm:$0xf]
        %v505 = vld [vmem:[%s6 + $0x1c4] sm:$0xf]
        %v506 = vld [vmem:[%s6 + $0x1c8] sm:$0xf]
        %v507 = vld [vmem:[%s6 + $0x1cc] sm:$0xf]
        %v508 = vld [vmem:[%s6 + $0x1d0] sm:$0xf]
        %v509 = vld [vmem:[%s6 + $0x1d4] sm:$0xf]
        %v510 = vld [vmem:[%s6 + $0x1d8] sm:$0xf]
        %v511 = vld [vmem:[%s6 + $0x1dc] sm:$0xf]
        %v512 = vld [vmem:[%s6 + $0x1e0] sm:$0xf]
        %v513 = vld [vmem:[%s6 + $0x1e4] sm:$0xf]
        %v514 = vld [vmem:[%s6 + $0x1e8] sm:$0xf]
        %v515 = vld [vmem:[%s6 + $0x1ec] sm:$0xf]
        %v516 = vld [vmem:[%s6 + $0x1f0] sm:$0xf]
        %v517 = vld [vmem:[%s6 + $0x1f4] sm:$0xf]
        %v518 = vld [vmem:[%s6 + $0x1f8] sm:$0xf]
        %v519 = vld [vmem:[%s6 + $0x1fc] sm:$0xf]
        %v520 = vld [vmem:[%s6 + $0x200] sm:$0xf]
        %v521 = vld [vmem:[%s6 + $0x204] sm:$0xf]
        %v522 = vld [vmem:[%s6 + $0x208] sm:$0xf]
        %v523 = vld [vmem:[%s6 + $0x20c] sm:$0xf]
        %v524 = vld [vmem:[%s6 + $0x210] sm:$0xf]
        %v525 = vld [vmem:[%s6 + $0x214] sm:$0xf]
        %v526 = vld [vmem:[%s6 + $0x218] sm:$0xf]
        %v527 = vld [vmem:[%s6 + $0x21c] sm:$0xf]
        %v528 = vld [vmem:[%s6 + $0x220] sm:$0xf]
        %v529 = vld [vmem:[%s6 + $0x224] sm:$0xf]
        %v530 = vld [vmem:[%s6 + $0x228] sm:$0xf]
        %v531 = vld [vmem:[%s6 + $0x22c] sm:$0xf]
        %v532 = vld [vmem:[%s6 + $0x230] sm:$0xf]
        %v533 = vld [vmem:[%s6 + $0x234] sm:$0xf]
        %v534 = vld [vmem:[%s6 + $0x238] sm:$0xf]
        %v535 = vld [vmem:[%s6 + $0x23c] sm:$0xf]
        %v536 = vld [vmem:[%s6 + $0x240] sm:$0xf]
        %v537 = vld [vmem:[%s6 + $0x244] sm:$0xf]
        %v538 = vld [vmem:[%s6 + $0x248] sm:$0xf]
        %v539 = vld [vmem:[%s6 + $0x24c] sm:$0xf]
        %v540 = vld [vmem:[%s6 + $0x250] sm:$0xf]
        %v541 = vld [vmem:[%s6 + $0x254] sm:$0xf]
        %v542 = vld [vmem:[%s6 + $0x258] sm:$0xf]
        %v543 = vld [vmem:[%s6 + $0x25c] sm:$0xf]
        %v544 = vld [vmem:[%s6 + $0x260] sm:$0xf]
        %v545 = vld [vmem:[%s6 + $0x264] sm:$0xf]
        %v546 = vld [vmem:[%s6 + $0x268] sm:$0xf]
        %v547 = vld [vmem:[%s6 + $0x26c] sm:$0xf]
        %v548 = vld [vmem:[%s6 + $0x270] sm:$0xf]
        %v549 = vld [vmem:[%s6 + $0x274] sm:$0xf]
        %v550 = vld [vmem:[%s6 + $0x278] sm:$0xf]
        %v551 = vld [vmem:[%s6 + $0x27c] sm:$0xf]
        %v560 = vunpack.c.l.b16 %v392
        %v561 = vunpack.c.l.b16 %v393
        %v562 = vunpack.c.l.b16 %v394
        %v563 = vunpack.c.l.b16 %v395
        %v564 = vunpack.c.l.b16 %v396
        %v565 = vunpack.c.l.b16 %v397
        %v566 = vunpack.c.l.b16 %v398
        %v567 = vunpack.c.l.b16 %v399
        %v568 = vpack.c.b16 %v561, %v560
        %v569 = vpack.c.b16 %v563, %v562
        %v570 = vpack.c.b16 %v565, %v564
        %v571 = vpack.c.b16 %v567, %v566
        %v577 = vsel %vm367, %v391, 0
        %579 = vmatprep.subr.bf16.mxu0 0
        %580 = vmatpush1.bf16.msra.mxu0 0
        %581 = vmatprep.subr.bf16.mxu0 0
        %582 = vmatpush1.bf16.msra.mxu0 0
        %583 = vmatprep.subr.bf16.mxu0 0
        %584 = vmatpush1.bf16.msra.mxu0 0
        %585 = vmatprep.subr.bf16.mxu0 0
        %586 = vmatpush1.bf16.msra.mxu0 0
        %587 = vmatprep.subr.bf16.mxu0 0
        %588 = vmatpush1.bf16.msra.mxu0 %v571
        %589 = vmatprep.subr.bf16.mxu0 0
        %590 = vmatpush1.bf16.msra.mxu0 %v570
        %591 = vmatprep.subr.bf16.mxu0 0
        %592 = vmatpush1.bf16.msra.mxu0 %v569
        %593 = vmatprep.subr.bf16.mxu0 0
        %594 = vmatpush1.bf16.msra.mxu0 %v568
        %595 = vmatprep.subr.bf16.mxu0 0
        %596 = vmatpush2.bf16.msra.mxu0 0
        %597 = vmatprep.subr.bf16.mxu0 0
        %598 = vmatpush2.bf16.msra.mxu0 0
        %599 = vmatprep.subr.bf16.mxu0 0
        %600 = vmatpush2.bf16.msra.mxu0 0
        %601 = vmatprep.subr.bf16.mxu0 0
        %602 = vmatpush2.bf16.msra.mxu0 0
        %603 = vmatprep.subr.bf16.mxu0 0
        %604 = vmatpush2.bf16.msra.mxu0 0
        %605 = vmatprep.subr.bf16.mxu0 0
        %606 = vmatpush2.bf16.msra.mxu0 0
        %607 = vmatprep.subr.bf16.mxu0 0
        %608 = vmatpush2.bf16.msra.mxu0 0
        %609 = vmatprep.subr.bf16.mxu0 0
        %610 = vmatpush2.bf16.msra.mxu0 0
        %611 = vmatprep.mubr.bf16.mxu0 0
        %612 = vmatmul.mubr.bf16.gmra.mxu0 %v577
        %v613 = vpop.f32.mrf.mxu0
        %v614 = vadd.f32 0.0, %v613
        %v615 = vpop.f32.mrf.mxu0
        %v616 = vpop.f32.mrf.mxu0
        %v617 = vadd.f32 0.0, %v616
        %v618 = vpop.f32.mrf.mxu0
        %619 = vdwg.mxu0
        %v628 = vunpack.c.l.b16 %v400
        %v629 = vunpack.c.l.b16 %v401
        %v630 = vunpack.c.l.b16 %v402
        %v631 = vunpack.c.l.b16 %v403
        %v632 = vunpack.c.l.b16 %v404
        %v633 = vunpack.c.l.b16 %v405
        %v634 = vunpack.c.l.b16 %v406
        %v635 = vunpack.c.l.b16 %v407
        %v636 = vpack.c.b16 %v629, %v628
        %v637 = vpack.c.b16 %v631, %v630
        %v638 = vpack.c.b16 %v633, %v632
        %v639 = vpack.c.b16 %v635, %v634
        %644 = vmatprep.subr.bf16.mxu0 0
        %645 = vmatpush1.bf16.msra.mxu0 0
        %646 = vmatprep.subr.bf16.mxu0 0
        %647 = vmatpush1.bf16.msra.mxu0 0
        %648 = vmatprep.subr.bf16.mxu0 0
        %649 = vmatpush1.bf16.msra.mxu0 0
        %650 = vmatprep.subr.bf16.mxu0 0
        %651 = vmatpush1.bf16.msra.mxu0 0
        %652 = vmatprep.subr.bf16.mxu0 0
        %653 = vmatpush1.bf16.msra.mxu0 %v639
        %654 = vmatprep.subr.bf16.mxu0 0
        %655 = vmatpush1.bf16.msra.mxu0 %v638
        %656 = vmatprep.subr.bf16.mxu0 0
        %657 = vmatpush1.bf16.msra.mxu0 %v637
        %658 = vmatprep.subr.bf16.mxu0 0
        %659 = vmatpush1.bf16.msra.mxu0 %v636
        %660 = vmatprep.subr.bf16.mxu0 0
        %661 = vmatpush2.bf16.msra.mxu0 0
        %662 = vmatprep.subr.bf16.mxu0 0
        %663 = vmatpush2.bf16.msra.mxu0 0
        %664 = vmatprep.subr.bf16.mxu0 0
        %665 = vmatpush2.bf16.msra.mxu0 0
        %666 = vmatprep.subr.bf16.mxu0 0
        %667 = vmatpush2.bf16.msra.mxu0 0
        %668 = vmatprep.subr.bf16.mxu0 0
        %669 = vmatpush2.bf16.msra.mxu0 0
        %670 = vmatprep.subr.bf16.mxu0 0
        %671 = vmatpush2.bf16.msra.mxu0 0
        %672 = vmatprep.subr.bf16.mxu0 0
        %673 = vmatpush2.bf16.msra.mxu0 0
        %674 = vmatprep.subr.bf16.mxu0 0
        %675 = vmatpush2.bf16.msra.mxu0 0
        %676 = vmatprep.mubr.bf16.mxu0 0
        %677 = vmatmul.mubr.bf16.gmra.mxu0 %v577
        %v678 = vpop.f32.mrf.mxu0
        %v679 = vadd.f32 0.0, %v678
        %v680 = vpop.f32.mrf.mxu0
        %v681 = vpop.f32.mrf.mxu0
        %v682 = vadd.f32 0.0, %v681
        %v683 = vpop.f32.mrf.mxu0
        %684 = vdwg.mxu0
        %v693 = vunpack.c.l.b16 %v408
        %v694 = vunpack.c.l.b16 %v409
        %v695 = vunpack.c.l.b16 %v410
        %v696 = vunpack.c.l.b16 %v411
        %v697 = vunpack.c.l.b16 %v412
        %v698 = vunpack.c.l.b16 %v413
        %v699 = vunpack.c.l.b16 %v414
        %v700 = vunpack.c.l.b16 %v415
        %v701 = vpack.c.b16 %v694, %v693
        %v702 = vpack.c.b16 %v696, %v695
        %v703 = vpack.c.b16 %v698, %v697
        %v704 = vpack.c.b16 %v700, %v699
        %709 = vmatprep.subr.bf16.mxu0 0
        %710 = vmatpush1.bf16.msra.mxu0 0
        %711 = vmatprep.subr.bf16.mxu0 0
        %712 = vmatpush1.bf16.msra.mxu0 0
        %713 = vmatprep.subr.bf16.mxu0 0
        %714 = vmatpush1.bf16.msra.mxu0 0
        %715 = vmatprep.subr.bf16.mxu0 0
        %716 = vmatpush1.bf16.msra.mxu0 0
        %717 = vmatprep.subr.bf16.mxu0 0
        %718 = vmatpush1.bf16.msra.mxu0 %v704
        %719 = vmatprep.subr.bf16.mxu0 0
        %720 = vmatpush1.bf16.msra.mxu0 %v703
        %721 = vmatprep.subr.bf16.mxu0 0
        %722 = vmatpush1.bf16.msra.mxu0 %v702
        %723 = vmatprep.subr.bf16.mxu0 0
        %724 = vmatpush1.bf16.msra.mxu0 %v701
        %725 = vmatprep.subr.bf16.mxu0 0
        %726 = vmatpush2.bf16.msra.mxu0 0
        %727 = vmatprep.subr.bf16.mxu0 0
        %728 = vmatpush2.bf16.msra.mxu0 0
        %729 = vmatprep.subr.bf16.mxu0 0
        %730 = vmatpush2.bf16.msra.mxu0 0
        %731 = vmatprep.subr.bf16.mxu0 0
        %732 = vmatpush2.bf16.msra.mxu0 0
        %733 = vmatprep.subr.bf16.mxu0 0
        %734 = vmatpush2.bf16.msra.mxu0 0
        %735 = vmatprep.subr.bf16.mxu0 0
        %736 = vmatpush2.bf16.msra.mxu0 0
        %737 = vmatprep.subr.bf16.mxu0 0
        %738 = vmatpush2.bf16.msra.mxu0 0
        %739 = vmatprep.subr.bf16.mxu0 0
        %740 = vmatpush2.bf16.msra.mxu0 0
        %741 = vmatprep.mubr.bf16.mxu0 0
        %742 = vmatmul.mubr.bf16.gmra.mxu0 %v577
        %v743 = vpop.f32.mrf.mxu0
        %v744 = vadd.f32 0.0, %v743
        %v745 = vpop.f32.mrf.mxu0
        %v746 = vpop.f32.mrf.mxu0
        %v747 = vadd.f32 0.0, %v746
        %v748 = vpop.f32.mrf.mxu0
        %749 = vdwg.mxu0
        %v758 = vunpack.c.l.b16 %v416
        %v759 = vunpack.c.l.b16 %v417
        %v760 = vunpack.c.l.b16 %v418
        %v761 = vunpack.c.l.b16 %v419
        %v762 = vunpack.c.l.b16 %v420
        %v763 = vunpack.c.l.b16 %v421
        %v764 = vunpack.c.l.b16 %v422
        %v765 = vunpack.c.l.b16 %v423
        %v766 = vpack.c.b16 %v759, %v758
        %v767 = vpack.c.b16 %v761, %v760
        %v768 = vpack.c.b16 %v763, %v762
        %v769 = vpack.c.b16 %v765, %v764
        %774 = vmatprep.subr.bf16.mxu0 0
        %775 = vmatpush1.bf16.msra.mxu0 0
        %776 = vmatprep.subr.bf16.mxu0 0
        %777 = vmatpush1.bf16.msra.mxu0 0
        %778 = vmatprep.subr.bf16.mxu0 0
        %779 = vmatpush1.bf16.msra.mxu0 0
        %780 = vmatprep.subr.bf16.mxu0 0
        %781 = vmatpush1.bf16.msra.mxu0 0
        %782 = vmatprep.subr.bf16.mxu0 0
        %783 = vmatpush1.bf16.msra.mxu0 %v769
        %784 = vmatprep.subr.bf16.mxu0 0
        %785 = vmatpush1.bf16.msra.mxu0 %v768
        %786 = vmatprep.subr.bf16.mxu0 0
        %787 = vmatpush1.bf16.msra.mxu0 %v767
        %788 = vmatprep.subr.bf16.mxu0 0
        %789 = vmatpush1.bf16.msra.mxu0 %v766
        %790 = vmatprep.subr.bf16.mxu0 0
        %791 = vmatpush2.bf16.msra.mxu0 0
        %792 = vmatprep.subr.bf16.mxu0 0
        %793 = vmatpush2.bf16.msra.mxu0 0
        %794 = vmatprep.subr.bf16.mxu0 0
        %795 = vmatpush2.bf16.msra.mxu0 0
        %796 = vmatprep.subr.bf16.mxu0 0
        %797 = vmatpush2.bf16.msra.mxu0 0
        %798 = vmatprep.subr.bf16.mxu0 0
        %799 = vmatpush2.bf16.msra.mxu0 0
        %800 = vmatprep.subr.bf16.mxu0 0
        %801 = vmatpush2.bf16.msra.mxu0 0
        %802 = vmatprep.subr.bf16.mxu0 0
        %803 = vmatpush2.bf16.msra.mxu0 0
        %804 = vmatprep.subr.bf16.mxu0 0
        %805 = vmatpush2.bf16.msra.mxu0 0
        %806 = vmatprep.mubr.bf16.mxu0 0
        %807 = vmatmul.mubr.bf16.gmra.mxu0 %v577
        %v808 = vpop.f32.mrf.mxu0
        %v809 = vadd.f32 0.0, %v808
        %v810 = vpop.f32.mrf.mxu0
        %v811 = vpop.f32.mrf.mxu0
        %v812 = vadd.f32 0.0, %v811
        %v813 = vpop.f32.mrf.mxu0
        %814 = vdwg.mxu0
        %v823 = vunpack.c.l.b16 %v424
        %v824 = vunpack.c.l.b16 %v425
        %v825 = vunpack.c.l.b16 %v426
        %v826 = vunpack.c.l.b16 %v427
        %v827 = vunpack.c.l.b16 %v428
        %v828 = vunpack.c.l.b16 %v429
        %v829 = vunpack.c.l.b16 %v430
        %v830 = vunpack.c.l.b16 %v431
        %v831 = vpack.c.b16 %v824, %v823
        %v832 = vpack.c.b16 %v826, %v825
        %v833 = vpack.c.b16 %v828, %v827
        %v834 = vpack.c.b16 %v830, %v829
        %839 = vmatprep.subr.bf16.mxu0 0
        %840 = vmatpush1.bf16.msra.mxu0 0
        %841 = vmatprep.subr.bf16.mxu0 0
        %842 = vmatpush1.bf16.msra.mxu0 0
        %843 = vmatprep.subr.bf16.mxu0 0
        %844 = vmatpush1.bf16.msra.mxu0 0
        %845 = vmatprep.subr.bf16.mxu0 0
        %846 = vmatpush1.bf16.msra.mxu0 0
        %847 = vmatprep.subr.bf16.mxu0 0
        %848 = vmatpush1.bf16.msra.mxu0 %v834
        %849 = vmatprep.subr.bf16.mxu0 0
        %850 = vmatpush1.bf16.msra.mxu0 %v833
        %851 = vmatprep.subr.bf16.mxu0 0
        %852 = vmatpush1.bf16.msra.mxu0 %v832
        %853 = vmatprep.subr.bf16.mxu0 0
        %854 = vmatpush1.bf16.msra.mxu0 %v831
        %855 = vmatprep.subr.bf16.mxu0 0
        %856 = vmatpush2.bf16.msra.mxu0 0
        %857 = vmatprep.subr.bf16.mxu0 0
        %858 = vmatpush2.bf16.msra.mxu0 0
        %859 = vmatprep.subr.bf16.mxu0 0
        %860 = vmatpush2.bf16.msra.mxu0 0
        %861 = vmatprep.subr.bf16.mxu0 0
        %862 = vmatpush2.bf16.msra.mxu0 0
        %863 = vmatprep.subr.bf16.mxu0 0
        %864 = vmatpush2.bf16.msra.mxu0 0
        %865 = vmatprep.subr.bf16.mxu0 0
        %866 = vmatpush2.bf16.msra.mxu0 0
        %867 = vmatprep.subr.bf16.mxu0 0
        %868 = vmatpush2.bf16.msra.mxu0 0
        %869 = vmatprep.subr.bf16.mxu0 0
        %870 = vmatpush2.bf16.msra.mxu0 0
        %871 = vmatprep.mubr.bf16.mxu0 0
        %872 = vmatmul.mubr.bf16.gmra.mxu0 %v577
        %v873 = vpop.f32.mrf.mxu0
        %v874 = vadd.f32 0.0, %v873
        %v875 = vpop.f32.mrf.mxu0
        %v876 = vpop.f32.mrf.mxu0
        %v877 = vadd.f32 0.0, %v876
        %v878 = vpop.f32.mrf.mxu0
        %879 = vdwg.mxu0
        %v888 = vunpack.c.l.b16 %v432
        %v889 = vunpack.c.l.b16 %v433
        %v890 = vunpack.c.l.b16 %v434
        %v891 = vunpack.c.l.b16 %v435
        %v892 = vunpack.c.l.b16 %v436
        %v893 = vunpack.c.l.b16 %v437
        %v894 = vunpack.c.l.b16 %v438
        %v895 = vunpack.c.l.b16 %v439
        %v896 = vpack.c.b16 %v889, %v888
        %v897 = vpack.c.b16 %v891, %v890
        %v898 = vpack.c.b16 %v893, %v892
        %v899 = vpack.c.b16 %v895, %v894
        %904 = vmatprep.subr.bf16.mxu0 0
        %905 = vmatpush1.bf16.msra.mxu0 0
        %906 = vmatprep.subr.bf16.mxu0 0
        %907 = vmatpush1.bf16.msra.mxu0 0
        %908 = vmatprep.subr.bf16.mxu0 0
        %909 = vmatpush1.bf16.msra.mxu0 0
        %910 = vmatprep.subr.bf16.mxu0 0
        %911 = vmatpush1.bf16.msra.mxu0 0
        %912 = vmatprep.subr.bf16.mxu0 0
        %913 = vmatpush1.bf16.msra.mxu0 %v899
        %914 = vmatprep.subr.bf16.mxu0 0
        %915 = vmatpush1.bf16.msra.mxu0 %v898
        %916 = vmatprep.subr.bf16.mxu0 0
        %917 = vmatpush1.bf16.msra.mxu0 %v897
        %918 = vmatprep.subr.bf16.mxu0 0
        %919 = vmatpush1.bf16.msra.mxu0 %v896
        %920 = vmatprep.subr.bf16.mxu0 0
        %921 = vmatpush2.bf16.msra.mxu0 0
        %922 = vmatprep.subr.bf16.mxu0 0
        %923 = vmatpush2.bf16.msra.mxu0 0
        %924 = vmatprep.subr.bf16.mxu0 0
        %925 = vmatpush2.bf16.msra.mxu0 0
        %926 = vmatprep.subr.bf16.mxu0 0
        %927 = vmatpush2.bf16.msra.mxu0 0
        %928 = vmatprep.subr.bf16.mxu0 0
        %929 = vmatpush2.bf16.msra.mxu0 0
        %930 = vmatprep.subr.bf16.mxu0 0
        %931 = vmatpush2.bf16.msra.mxu0 0
        %932 = vmatprep.subr.bf16.mxu0 0
        %933 = vmatpush2.bf16.msra.mxu0 0
        %934 = vmatprep.subr.bf16.mxu0 0
        %935 = vmatpush2.bf16.msra.mxu0 0
        %936 = vmatprep.mubr.bf16.mxu0 0
        %937 = vmatmul.mubr.bf16.gmra.mxu0 %v577
        %v938 = vpop.f32.mrf.mxu0
        %v939 = vadd.f32 0.0, %v938
        %v940 = vpop.f32.mrf.mxu0
        %v941 = vpop.f32.mrf.mxu0
        %v942 = vadd.f32 0.0, %v941
        %v943 = vpop.f32.mrf.mxu0
        %944 = vdwg.mxu0
        %v953 = vunpack.c.l.b16 %v440
        %v954 = vunpack.c.l.b16 %v441
        %v955 = vunpack.c.l.b16 %v442
        %v956 = vunpack.c.l.b16 %v443
        %v957 = vunpack.c.l.b16 %v444
        %v958 = vunpack.c.l.b16 %v445
        %v959 = vunpack.c.l.b16 %v446
        %v960 = vunpack.c.l.b16 %v447
        %v961 = vpack.c.b16 %v954, %v953
        %v962 = vpack.c.b16 %v956, %v955
        %v963 = vpack.c.b16 %v958, %v957
        %v964 = vpack.c.b16 %v960, %v959
        %969 = vmatprep.subr.bf16.mxu0 0
        %970 = vmatpush1.bf16.msra.mxu0 0
        %971 = vmatprep.subr.bf16.mxu0 0
        %972 = vmatpush1.bf16.msra.mxu0 0
        %973 = vmatprep.subr.bf16.mxu0 0
        %974 = vmatpush1.bf16.msra.mxu0 0
        %975 = vmatprep.subr.bf16.mxu0 0
        %976 = vmatpush1.bf16.msra.mxu0 0
        %977 = vmatprep.subr.bf16.mxu0 0
        %978 = vmatpush1.bf16.msra.mxu0 %v964
        %979 = vmatprep.subr.bf16.mxu0 0
        %980 = vmatpush1.bf16.msra.mxu0 %v963
        %981 = vmatprep.subr.bf16.mxu0 0
        %982 = vmatpush1.bf16.msra.mxu0 %v962
        %983 = vmatprep.subr.bf16.mxu0 0
        %984 = vmatpush1.bf16.msra.mxu0 %v961
        %985 = vmatprep.subr.bf16.mxu0 0
        %986 = vmatpush2.bf16.msra.mxu0 0
        %987 = vmatprep.subr.bf16.mxu0 0
        %988 = vmatpush2.bf16.msra.mxu0 0
        %989 = vmatprep.subr.bf16.mxu0 0
        %990 = vmatpush2.bf16.msra.mxu0 0
        %991 = vmatprep.subr.bf16.mxu0 0
        %992 = vmatpush2.bf16.msra.mxu0 0
        %993 = vmatprep.subr.bf16.mxu0 0
        %994 = vmatpush2.bf16.msra.mxu0 0
        %995 = vmatprep.subr.bf16.mxu0 0
        %996 = vmatpush2.bf16.msra.mxu0 0
        %997 = vmatprep.subr.bf16.mxu0 0
        %998 = vmatpush2.bf16.msra.mxu0 0
        %999 = vmatprep.subr.bf16.mxu0 0
        %1000 = vmatpush2.bf16.msra.mxu0 0
        %1001 = vmatprep.mubr.bf16.mxu0 0
        %1002 = vmatmul.mubr.bf16.gmra.mxu0 %v577
        %v1003 = vpop.f32.mrf.mxu0
        %v1004 = vadd.f32 0.0, %v1003
        %v1005 = vpop.f32.mrf.mxu0
        %v1006 = vpop.f32.mrf.mxu0
        %v1007 = vadd.f32 0.0, %v1006
        %v1008 = vpop.f32.mrf.mxu0
        %1009 = vdwg.mxu0
        %v1018 = vunpack.c.l.b16 %v448
        %v1019 = vunpack.c.l.b16 %v449
        %v1020 = vunpack.c.l.b16 %v450
        %v1021 = vunpack.c.l.b16 %v451
        %v1022 = vunpack.c.l.b16 %v452
        %v1023 = vunpack.c.l.b16 %v453
        %v1024 = vunpack.c.l.b16 %v454
        %v1025 = vunpack.c.l.b16 %v455
        %v1026 = vpack.c.b16 %v1019, %v1018
        %v1027 = vpack.c.b16 %v1021, %v1020
        %v1028 = vpack.c.b16 %v1023, %v1022
        %v1029 = vpack.c.b16 %v1025, %v1024
        %1034 = vmatprep.subr.bf16.mxu0 0
        %1035 = vmatpush1.bf16.msra.mxu0 0
        %1036 = vmatprep.subr.bf16.mxu0 0
        %1037 = vmatpush1.bf16.msra.mxu0 0
        %1038 = vmatprep.subr.bf16.mxu0 0
        %1039 = vmatpush1.bf16.msra.mxu0 0
        %1040 = vmatprep.subr.bf16.mxu0 0
        %1041 = vmatpush1.bf16.msra.mxu0 0
        %1042 = vmatprep.subr.bf16.mxu0 0
        %1043 = vmatpush1.bf16.msra.mxu0 %v1029
        %1044 = vmatprep.subr.bf16.mxu0 0
        %1045 = vmatpush1.bf16.msra.mxu0 %v1028
        %1046 = vmatprep.subr.bf16.mxu0 0
        %1047 = vmatpush1.bf16.msra.mxu0 %v1027
        %1048 = vmatprep.subr.bf16.mxu0 0
        %1049 = vmatpush1.bf16.msra.mxu0 %v1026
        %1050 = vmatprep.subr.bf16.mxu0 0
        %1051 = vmatpush2.bf16.msra.mxu0 0
        %1052 = vmatprep.subr.bf16.mxu0 0
        %1053 = vmatpush2.bf16.msra.mxu0 0
        %1054 = vmatprep.subr.bf16.mxu0 0
        %1055 = vmatpush2.bf16.msra.mxu0 0
        %1056 = vmatprep.subr.bf16.mxu0 0
        %1057 = vmatpush2.bf16.msra.mxu0 0
        %1058 = vmatprep.subr.bf16.mxu0 0
        %1059 = vmatpush2.bf16.msra.mxu0 0
        %1060 = vmatprep.subr.bf16.mxu0 0
        %1061 = vmatpush2.bf16.msra.mxu0 0
        %1062 = vmatprep.subr.bf16.mxu0 0
        %1063 = vmatpush2.bf16.msra.mxu0 0
        %1064 = vmatprep.subr.bf16.mxu0 0
        %1065 = vmatpush2.bf16.msra.mxu0 0
        %1066 = vmatprep.mubr.bf16.mxu0 0
        %1067 = vmatmul.mubr.bf16.gmra.mxu0 %v577
        %v1068 = vpop.f32.mrf.mxu0
        %v1069 = vadd.f32 0.0, %v1068
        %v1070 = vpop.f32.mrf.mxu0
        %v1071 = vpop.f32.mrf.mxu0
        %v1072 = vadd.f32 0.0, %v1071
        %v1073 = vpop.f32.mrf.mxu0
        %1074 = vdwg.mxu0
        %v1083 = vunpack.c.l.b16 %v456
        %v1084 = vunpack.c.l.b16 %v457
        %v1085 = vunpack.c.l.b16 %v458
        %v1086 = vunpack.c.l.b16 %v459
        %v1087 = vunpack.c.l.b16 %v460
        %v1088 = vunpack.c.l.b16 %v461
        %v1089 = vunpack.c.l.b16 %v462
        %v1090 = vunpack.c.l.b16 %v463
        %v1091 = vpack.c.b16 %v1084, %v1083
        %v1092 = vpack.c.b16 %v1086, %v1085
        %v1093 = vpack.c.b16 %v1088, %v1087
        %v1094 = vpack.c.b16 %v1090, %v1089
        %1099 = vmatprep.subr.bf16.mxu0 0
        %1100 = vmatpush1.bf16.msra.mxu0 0
        %1101 = vmatprep.subr.bf16.mxu0 0
        %1102 = vmatpush1.bf16.msra.mxu0 0
        %1103 = vmatprep.subr.bf16.mxu0 0
        %1104 = vmatpush1.bf16.msra.mxu0 0
        %1105 = vmatprep.subr.bf16.mxu0 0
        %1106 = vmatpush1.bf16.msra.mxu0 0
        %1107 = vmatprep.subr.bf16.mxu0 0
        %1108 = vmatpush1.bf16.msra.mxu0 %v1094
        %1109 = vmatprep.subr.bf16.mxu0 0
        %1110 = vmatpush1.bf16.msra.mxu0 %v1093
        %1111 = vmatprep.subr.bf16.mxu0 0
        %1112 = vmatpush1.bf16.msra.mxu0 %v1092
        %1113 = vmatprep.subr.bf16.mxu0 0
        %1114 = vmatpush1.bf16.msra.mxu0 %v1091
        %1115 = vmatprep.subr.bf16.mxu0 0
        %1116 = vmatpush2.bf16.msra.mxu0 0
        %1117 = vmatprep.subr.bf16.mxu0 0
        %1118 = vmatpush2.bf16.msra.mxu0 0
        %1119 = vmatprep.subr.bf16.mxu0 0
        %1120 = vmatpush2.bf16.msra.mxu0 0
        %1121 = vmatprep.subr.bf16.mxu0 0
        %1122 = vmatpush2.bf16.msra.mxu0 0
        %1123 = vmatprep.subr.bf16.mxu0 0
        %1124 = vmatpush2.bf16.msra.mxu0 0
        %1125 = vmatprep.subr.bf16.mxu0 0
        %1126 = vmatpush2.bf16.msra.mxu0 0
        %1127 = vmatprep.subr.bf16.mxu0 0
        %1128 = vmatpush2.bf16.msra.mxu0 0
        %1129 = vmatprep.subr.bf16.mxu0 0
        %1130 = vmatpush2.bf16.msra.mxu0 0
        %1131 = vmatprep.mubr.bf16.mxu0 0
        %1132 = vmatmul.mubr.bf16.gmra.mxu0 %v577
        %v1133 = vpop.f32.mrf.mxu0
        %v1134 = vadd.f32 0.0, %v1133
        %v1135 = vpop.f32.mrf.mxu0
        %v1136 = vpop.f32.mrf.mxu0
        %v1137 = vadd.f32 0.0, %v1136
        %v1138 = vpop.f32.mrf.mxu0
        %1139 = vdwg.mxu0
        %v1148 = vunpack.c.l.b16 %v464
        %v1149 = vunpack.c.l.b16 %v465
        %v1150 = vunpack.c.l.b16 %v466
        %v1151 = vunpack.c.l.b16 %v467
        %v1152 = vunpack.c.l.b16 %v468
        %v1153 = vunpack.c.l.b16 %v469
        %v1154 = vunpack.c.l.b16 %v470
        %v1155 = vunpack.c.l.b16 %v471
        %v1156 = vpack.c.b16 %v1149, %v1148
        %v1157 = vpack.c.b16 %v1151, %v1150
        %v1158 = vpack.c.b16 %v1153, %v1152
        %v1159 = vpack.c.b16 %v1155, %v1154
        %1164 = vmatprep.subr.bf16.mxu0 0
        %1165 = vmatpush1.bf16.msra.mxu0 0
        %1166 = vmatprep.subr.bf16.mxu0 0
        %1167 = vmatpush1.bf16.msra.mxu0 0
        %1168 = vmatprep.subr.bf16.mxu0 0
        %1169 = vmatpush1.bf16.msra.mxu0 0
        %1170 = vmatprep.subr.bf16.mxu0 0
        %1171 = vmatpush1.bf16.msra.mxu0 0
        %1172 = vmatprep.subr.bf16.mxu0 0
        %1173 = vmatpush1.bf16.msra.mxu0 %v1159
        %1174 = vmatprep.subr.bf16.mxu0 0
        %1175 = vmatpush1.bf16.msra.mxu0 %v1158
        %1176 = vmatprep.subr.bf16.mxu0 0
        %1177 = vmatpush1.bf16.msra.mxu0 %v1157
        %1178 = vmatprep.subr.bf16.mxu0 0
        %1179 = vmatpush1.bf16.msra.mxu0 %v1156
        %1180 = vmatprep.subr.bf16.mxu0 0
        %1181 = vmatpush2.bf16.msra.mxu0 0
        %1182 = vmatprep.subr.bf16.mxu0 0
        %1183 = vmatpush2.bf16.msra.mxu0 0
        %1184 = vmatprep.subr.bf16.mxu0 0
        %1185 = vmatpush2.bf16.msra.mxu0 0
        %1186 = vmatprep.subr.bf16.mxu0 0
        %1187 = vmatpush2.bf16.msra.mxu0 0
        %1188 = vmatprep.subr.bf16.mxu0 0
        %1189 = vmatpush2.bf16.msra.mxu0 0
        %1190 = vmatprep.subr.bf16.mxu0 0
        %1191 = vmatpush2.bf16.msra.mxu0 0
        %1192 = vmatprep.subr.bf16.mxu0 0
        %1193 = vmatpush2.bf16.msra.mxu0 0
        %1194 = vmatprep.subr.bf16.mxu0 0
        %1195 = vmatpush2.bf16.msra.mxu0 0
        %1196 = vmatprep.mubr.bf16.mxu0 0
        %1197 = vmatmul.mubr.bf16.gmra.mxu0 %v577
        %v1198 = vpop.f32.mrf.mxu0
        %v1199 = vadd.f32 0.0, %v1198
        %v1200 = vpop.f32.mrf.mxu0
        %v1201 = vpop.f32.mrf.mxu0
        %v1202 = vadd.f32 0.0, %v1201
        %v1203 = vpop.f32.mrf.mxu0
        %1204 = vdwg.mxu0
        %v1213 = vunpack.c.l.b16 %v472
        %v1214 = vunpack.c.l.b16 %v473
        %v1215 = vunpack.c.l.b16 %v474
        %v1216 = vunpack.c.l.b16 %v475
        %v1217 = vunpack.c.l.b16 %v476
        %v1218 = vunpack.c.l.b16 %v477
        %v1219 = vunpack.c.l.b16 %v478
        %v1220 = vunpack.c.l.b16 %v479
        %v1221 = vpack.c.b16 %v1214, %v1213
        %v1222 = vpack.c.b16 %v1216, %v1215
        %v1223 = vpack.c.b16 %v1218, %v1217
        %v1224 = vpack.c.b16 %v1220, %v1219
        %1229 = vmatprep.subr.bf16.mxu0 0
        %1230 = vmatpush1.bf16.msra.mxu0 0
        %1231 = vmatprep.subr.bf16.mxu0 0
        %1232 = vmatpush1.bf16.msra.mxu0 0
        %1233 = vmatprep.subr.bf16.mxu0 0
        %1234 = vmatpush1.bf16.msra.mxu0 0
        %1235 = vmatprep.subr.bf16.mxu0 0
        %1236 = vmatpush1.bf16.msra.mxu0 0
        %1237 = vmatprep.subr.bf16.mxu0 0
        %1238 = vmatpush1.bf16.msra.mxu0 %v1224
        %1239 = vmatprep.subr.bf16.mxu0 0
        %1240 = vmatpush1.bf16.msra.mxu0 %v1223
        %1241 = vmatprep.subr.bf16.mxu0 0
        %1242 = vmatpush1.bf16.msra.mxu0 %v1222
        %1243 = vmatprep.subr.bf16.mxu0 0
        %1244 = vmatpush1.bf16.msra.mxu0 %v1221
        %1245 = vmatprep.subr.bf16.mxu0 0
        %1246 = vmatpush2.bf16.msra.mxu0 0
        %1247 = vmatprep.subr.bf16.mxu0 0
        %1248 = vmatpush2.bf16.msra.mxu0 0
        %1249 = vmatprep.subr.bf16.mxu0 0
        %1250 = vmatpush2.bf16.msra.mxu0 0
        %1251 = vmatprep.subr.bf16.mxu0 0
        %1252 = vmatpush2.bf16.msra.mxu0 0
        %1253 = vmatprep.subr.bf16.mxu0 0
        %1254 = vmatpush2.bf16.msra.mxu0 0
        %1255 = vmatprep.subr.bf16.mxu0 0
        %1256 = vmatpush2.bf16.msra.mxu0 0
        %1257 = vmatprep.subr.bf16.mxu0 0
        %1258 = vmatpush2.bf16.msra.mxu0 0
        %1259 = vmatprep.subr.bf16.mxu0 0
        %1260 = vmatpush2.bf16.msra.mxu0 0
        %1261 = vmatprep.mubr.bf16.mxu0 0
        %1262 = vmatmul.mubr.bf16.gmra.mxu0 %v577
        %v1263 = vpop.f32.mrf.mxu0
        %v1264 = vadd.f32 0.0, %v1263
        %v1265 = vpop.f32.mrf.mxu0
        %v1266 = vpop.f32.mrf.mxu0
        %v1267 = vadd.f32 0.0, %v1266
        %v1268 = vpop.f32.mrf.mxu0
        %1269 = vdwg.mxu0
        %v1278 = vunpack.c.l.b16 %v480
        %v1279 = vunpack.c.l.b16 %v481
        %v1280 = vunpack.c.l.b16 %v482
        %v1281 = vunpack.c.l.b16 %v483
        %v1282 = vunpack.c.l.b16 %v484
        %v1283 = vunpack.c.l.b16 %v485
        %v1284 = vunpack.c.l.b16 %v486
        %v1285 = vunpack.c.l.b16 %v487
        %v1286 = vpack.c.b16 %v1279, %v1278
        %v1287 = vpack.c.b16 %v1281, %v1280
        %v1288 = vpack.c.b16 %v1283, %v1282
        %v1289 = vpack.c.b16 %v1285, %v1284
        %1294 = vmatprep.subr.bf16.mxu0 0
        %1295 = vmatpush1.bf16.msra.mxu0 0
        %1296 = vmatprep.subr.bf16.mxu0 0
        %1297 = vmatpush1.bf16.msra.mxu0 0
        %1298 = vmatprep.subr.bf16.mxu0 0
        %1299 = vmatpush1.bf16.msra.mxu0 0
        %1300 = vmatprep.subr.bf16.mxu0 0
        %1301 = vmatpush1.bf16.msra.mxu0 0
        %1302 = vmatprep.subr.bf16.mxu0 0
        %1303 = vmatpush1.bf16.msra.mxu0 %v1289
        %1304 = vmatprep.subr.bf16.mxu0 0
        %1305 = vmatpush1.bf16.msra.mxu0 %v1288
        %1306 = vmatprep.subr.bf16.mxu0 0
        %1307 = vmatpush1.bf16.msra.mxu0 %v1287
        %1308 = vmatprep.subr.bf16.mxu0 0
        %1309 = vmatpush1.bf16.msra.mxu0 %v1286
        %1310 = vmatprep.subr.bf16.mxu0 0
        %1311 = vmatpush2.bf16.msra.mxu0 0
        %1312 = vmatprep.subr.bf16.mxu0 0
        %1313 = vmatpush2.bf16.msra.mxu0 0
        %1314 = vmatprep.subr.bf16.mxu0 0
        %1315 = vmatpush2.bf16.msra.mxu0 0
        %1316 = vmatprep.subr.bf16.mxu0 0
        %1317 = vmatpush2.bf16.msra.mxu0 0
        %1318 = vmatprep.subr.bf16.mxu0 0
        %1319 = vmatpush2.bf16.msra.mxu0 0
        %1320 = vmatprep.subr.bf16.mxu0 0
        %1321 = vmatpush2.bf16.msra.mxu0 0
        %1322 = vmatprep.subr.bf16.mxu0 0
        %1323 = vmatpush2.bf16.msra.mxu0 0
        %1324 = vmatprep.subr.bf16.mxu0 0
        %1325 = vmatpush2.bf16.msra.mxu0 0
        %1326 = vmatprep.mubr.bf16.mxu0 0
        %1327 = vmatmul.mubr.bf16.gmra.mxu0 %v577
        %v1328 = vpop.f32.mrf.mxu0
        %v1329 = vadd.f32 0.0, %v1328
        %v1330 = vpop.f32.mrf.mxu0
        %v1331 = vpop.f32.mrf.mxu0
        %v1332 = vadd.f32 0.0, %v1331
        %v1333 = vpop.f32.mrf.mxu0
        %1334 = vdwg.mxu0
        %v1343 = vunpack.c.l.b16 %v488
        %v1344 = vunpack.c.l.b16 %v489
        %v1345 = vunpack.c.l.b16 %v490
        %v1346 = vunpack.c.l.b16 %v491
        %v1347 = vunpack.c.l.b16 %v492
        %v1348 = vunpack.c.l.b16 %v493
        %v1349 = vunpack.c.l.b16 %v494
        %v1350 = vunpack.c.l.b16 %v495
        %v1351 = vpack.c.b16 %v1344, %v1343
        %v1352 = vpack.c.b16 %v1346, %v1345
        %v1353 = vpack.c.b16 %v1348, %v1347
        %v1354 = vpack.c.b16 %v1350, %v1349
        %1359 = vmatprep.subr.bf16.mxu0 0
        %1360 = vmatpush1.bf16.msra.mxu0 0
        %1361 = vmatprep.subr.bf16.mxu0 0
        %1362 = vmatpush1.bf16.msra.mxu0 0
        %1363 = vmatprep.subr.bf16.mxu0 0
        %1364 = vmatpush1.bf16.msra.mxu0 0
        %1365 = vmatprep.subr.bf16.mxu0 0
        %1366 = vmatpush1.bf16.msra.mxu0 0
        %1367 = vmatprep.subr.bf16.mxu0 0
        %1368 = vmatpush1.bf16.msra.mxu0 %v1354
        %1369 = vmatprep.subr.bf16.mxu0 0
        %1370 = vmatpush1.bf16.msra.mxu0 %v1353
        %1371 = vmatprep.subr.bf16.mxu0 0
        %1372 = vmatpush1.bf16.msra.mxu0 %v1352
        %1373 = vmatprep.subr.bf16.mxu0 0
        %1374 = vmatpush1.bf16.msra.mxu0 %v1351
        %1375 = vmatprep.subr.bf16.mxu0 0
        %1376 = vmatpush2.bf16.msra.mxu0 0
        %1377 = vmatprep.subr.bf16.mxu0 0
        %1378 = vmatpush2.bf16.msra.mxu0 0
        %1379 = vmatprep.subr.bf16.mxu0 0
        %1380 = vmatpush2.bf16.msra.mxu0 0
        %1381 = vmatprep.subr.bf16.mxu0 0
        %1382 = vmatpush2.bf16.msra.mxu0 0
        %1383 = vmatprep.subr.bf16.mxu0 0
        %1384 = vmatpush2.bf16.msra.mxu0 0
        %1385 = vmatprep.subr.bf16.mxu0 0
        %1386 = vmatpush2.bf16.msra.mxu0 0
        %1387 = vmatprep.subr.bf16.mxu0 0
        %1388 = vmatpush2.bf16.msra.mxu0 0
        %1389 = vmatprep.subr.bf16.mxu0 0
        %1390 = vmatpush2.bf16.msra.mxu0 0
        %1391 = vmatprep.mubr.bf16.mxu0 0
        %1392 = vmatmul.mubr.bf16.gmra.mxu0 %v577
        %v1393 = vpop.f32.mrf.mxu0
        %v1394 = vadd.f32 0.0, %v1393
        %v1395 = vpop.f32.mrf.mxu0
        %v1396 = vpop.f32.mrf.mxu0
        %v1397 = vadd.f32 0.0, %v1396
        %v1398 = vpop.f32.mrf.mxu0
        %1399 = vdwg.mxu0
        %v1408 = vunpack.c.l.b16 %v496
        %v1409 = vunpack.c.l.b16 %v497
        %v1410 = vunpack.c.l.b16 %v498
        %v1411 = vunpack.c.l.b16 %v499
        %v1412 = vunpack.c.l.b16 %v500
        %v1413 = vunpack.c.l.b16 %v501
        %v1414 = vunpack.c.l.b16 %v502
        %v1415 = vunpack.c.l.b16 %v503
        %v1416 = vpack.c.b16 %v1409, %v1408
        %v1417 = vpack.c.b16 %v1411, %v1410
        %v1418 = vpack.c.b16 %v1413, %v1412
        %v1419 = vpack.c.b16 %v1415, %v1414
        %1424 = vmatprep.subr.bf16.mxu0 0
        %1425 = vmatpush1.bf16.msra.mxu0 0
        %1426 = vmatprep.subr.bf16.mxu0 0
        %1427 = vmatpush1.bf16.msra.mxu0 0
        %1428 = vmatprep.subr.bf16.mxu0 0
        %1429 = vmatpush1.bf16.msra.mxu0 0
        %1430 = vmatprep.subr.bf16.mxu0 0
        %1431 = vmatpush1.bf16.msra.mxu0 0
        %1432 = vmatprep.subr.bf16.mxu0 0
        %1433 = vmatpush1.bf16.msra.mxu0 %v1419
        %1434 = vmatprep.subr.bf16.mxu0 0
        %1435 = vmatpush1.bf16.msra.mxu0 %v1418
        %1436 = vmatprep.subr.bf16.mxu0 0
        %1437 = vmatpush1.bf16.msra.mxu0 %v1417
        %1438 = vmatprep.subr.bf16.mxu0 0
        %1439 = vmatpush1.bf16.msra.mxu0 %v1416
        %1440 = vmatprep.subr.bf16.mxu0 0
        %1441 = vmatpush2.bf16.msra.mxu0 0
        %1442 = vmatprep.subr.bf16.mxu0 0
        %1443 = vmatpush2.bf16.msra.mxu0 0
        %1444 = vmatprep.subr.bf16.mxu0 0
        %1445 = vmatpush2.bf16.msra.mxu0 0
        %1446 = vmatprep.subr.bf16.mxu0 0
        %1447 = vmatpush2.bf16.msra.mxu0 0
        %1448 = vmatprep.subr.bf16.mxu0 0
        %1449 = vmatpush2.bf16.msra.mxu0 0
        %1450 = vmatprep.subr.bf16.mxu0 0
        %1451 = vmatpush2.bf16.msra.mxu0 0
        %1452 = vmatprep.subr.bf16.mxu0 0
        %1453 = vmatpush2.bf16.msra.mxu0 0
        %1454 = vmatprep.subr.bf16.mxu0 0
        %1455 = vmatpush2.bf16.msra.mxu0 0
        %1456 = vmatprep.mubr.bf16.mxu0 0
        %1457 = vmatmul.mubr.bf16.gmra.mxu0 %v577
        %v1458 = vpop.f32.mrf.mxu0
        %v1459 = vadd.f32 0.0, %v1458
        %v1460 = vpop.f32.mrf.mxu0
        %v1461 = vpop.f32.mrf.mxu0
        %v1462 = vadd.f32 0.0, %v1461
        %v1463 = vpop.f32.mrf.mxu0
        %1464 = vdwg.mxu0
        %v1473 = vunpack.c.l.b16 %v504
        %v1474 = vunpack.c.l.b16 %v505
        %v1475 = vunpack.c.l.b16 %v506
        %v1476 = vunpack.c.l.b16 %v507
        %v1477 = vunpack.c.l.b16 %v508
        %v1478 = vunpack.c.l.b16 %v509
        %v1479 = vunpack.c.l.b16 %v510
        %v1480 = vunpack.c.l.b16 %v511
        %v1481 = vpack.c.b16 %v1474, %v1473
        %v1482 = vpack.c.b16 %v1476, %v1475
        %v1483 = vpack.c.b16 %v1478, %v1477
        %v1484 = vpack.c.b16 %v1480, %v1479
        %1489 = vmatprep.subr.bf16.mxu0 0
        %1490 = vmatpush1.bf16.msra.mxu0 0
        %1491 = vmatprep.subr.bf16.mxu0 0
        %1492 = vmatpush1.bf16.msra.mxu0 0
        %1493 = vmatprep.subr.bf16.mxu0 0
        %1494 = vmatpush1.bf16.msra.mxu0 0
        %1495 = vmatprep.subr.bf16.mxu0 0
        %1496 = vmatpush1.bf16.msra.mxu0 0
        %1497 = vmatprep.subr.bf16.mxu0 0
        %1498 = vmatpush1.bf16.msra.mxu0 %v1484
        %1499 = vmatprep.subr.bf16.mxu0 0
        %1500 = vmatpush1.bf16.msra.mxu0 %v1483
        %1501 = vmatprep.subr.bf16.mxu0 0
        %1502 = vmatpush1.bf16.msra.mxu0 %v1482
        %1503 = vmatprep.subr.bf16.mxu0 0
        %1504 = vmatpush1.bf16.msra.mxu0 %v1481
        %1505 = vmatprep.subr.bf16.mxu0 0
        %1506 = vmatpush2.bf16.msra.mxu0 0
        %1507 = vmatprep.subr.bf16.mxu0 0
        %1508 = vmatpush2.bf16.msra.mxu0 0
        %1509 = vmatprep.subr.bf16.mxu0 0
        %1510 = vmatpush2.bf16.msra.mxu0 0
        %1511 = vmatprep.subr.bf16.mxu0 0
        %1512 = vmatpush2.bf16.msra.mxu0 0
        %1513 = vmatprep.subr.bf16.mxu0 0
        %1514 = vmatpush2.bf16.msra.mxu0 0
        %1515 = vmatprep.subr.bf16.mxu0 0
        %1516 = vmatpush2.bf16.msra.mxu0 0
        %1517 = vmatprep.subr.bf16.mxu0 0
        %1518 = vmatpush2.bf16.msra.mxu0 0
        %1519 = vmatprep.subr.bf16.mxu0 0
        %1520 = vmatpush2.bf16.msra.mxu0 0
        %1521 = vmatprep.mubr.bf16.mxu0 0
        %1522 = vmatmul.mubr.bf16.gmra.mxu0 %v577
        %v1523 = vpop.f32.mrf.mxu0
        %v1524 = vadd.f32 0.0, %v1523
        %v1525 = vpop.f32.mrf.mxu0
        %v1526 = vpop.f32.mrf.mxu0
        %v1527 = vadd.f32 0.0, %v1526
        %v1528 = vpop.f32.mrf.mxu0
        %1529 = vdwg.mxu0
        %v1538 = vunpack.c.l.b16 %v512
        %v1539 = vunpack.c.l.b16 %v513
        %v1540 = vunpack.c.l.b16 %v514
        %v1541 = vunpack.c.l.b16 %v515
        %v1542 = vunpack.c.l.b16 %v516
        %v1543 = vunpack.c.l.b16 %v517
        %v1544 = vunpack.c.l.b16 %v518
        %v1545 = vunpack.c.l.b16 %v519
        %v1546 = vpack.c.b16 %v1539, %v1538
        %v1547 = vpack.c.b16 %v1541, %v1540
        %v1548 = vpack.c.b16 %v1543, %v1542
        %v1549 = vpack.c.b16 %v1545, %v1544
        %1554 = vmatprep.subr.bf16.mxu0 0
        %1555 = vmatpush1.bf16.msra.mxu0 0
        %1556 = vmatprep.subr.bf16.mxu0 0
        %1557 = vmatpush1.bf16.msra.mxu0 0
        %1558 = vmatprep.subr.bf16.mxu0 0
        %1559 = vmatpush1.bf16.msra.mxu0 0
        %1560 = vmatprep.subr.bf16.mxu0 0
        %1561 = vmatpush1.bf16.msra.mxu0 0
        %1562 = vmatprep.subr.bf16.mxu0 0
        %1563 = vmatpush1.bf16.msra.mxu0 %v1549
        %1564 = vmatprep.subr.bf16.mxu0 0
        %1565 = vmatpush1.bf16.msra.mxu0 %v1548
        %1566 = vmatprep.subr.bf16.mxu0 0
        %1567 = vmatpush1.bf16.msra.mxu0 %v1547
        %1568 = vmatprep.subr.bf16.mxu0 0
        %1569 = vmatpush1.bf16.msra.mxu0 %v1546
        %1570 = vmatprep.subr.bf16.mxu0 0
        %1571 = vmatpush2.bf16.msra.mxu0 0
        %1572 = vmatprep.subr.bf16.mxu0 0
        %1573 = vmatpush2.bf16.msra.mxu0 0
        %1574 = vmatprep.subr.bf16.mxu0 0
        %1575 = vmatpush2.bf16.msra.mxu0 0
        %1576 = vmatprep.subr.bf16.mxu0 0
        %1577 = vmatpush2.bf16.msra.mxu0 0
        %1578 = vmatprep.subr.bf16.mxu0 0
        %1579 = vmatpush2.bf16.msra.mxu0 0
        %1580 = vmatprep.subr.bf16.mxu0 0
        %1581 = vmatpush2.bf16.msra.mxu0 0
        %1582 = vmatprep.subr.bf16.mxu0 0
        %1583 = vmatpush2.bf16.msra.mxu0 0
        %1584 = vmatprep.subr.bf16.mxu0 0
        %1585 = vmatpush2.bf16.msra.mxu0 0
        %1586 = vmatprep.mubr.bf16.mxu0 0
        %1587 = vmatmul.mubr.bf16.gmra.mxu0 %v577
        %v1588 = vpop.f32.mrf.mxu0
        %v1589 = vadd.f32 0.0, %v1588
        %v1590 = vpop.f32.mrf.mxu0
        %v1591 = vpop.f32.mrf.mxu0
        %v1592 = vadd.f32 0.0, %v1591
        %v1593 = vpop.f32.mrf.mxu0
        %1594 = vdwg.mxu0
        %v1603 = vunpack.c.l.b16 %v520
        %v1604 = vunpack.c.l.b16 %v521
        %v1605 = vunpack.c.l.b16 %v522
        %v1606 = vunpack.c.l.b16 %v523
        %v1607 = vunpack.c.l.b16 %v524
        %v1608 = vunpack.c.l.b16 %v525
        %v1609 = vunpack.c.l.b16 %v526
        %v1610 = vunpack.c.l.b16 %v527
        %v1611 = vpack.c.b16 %v1604, %v1603
        %v1612 = vpack.c.b16 %v1606, %v1605
        %v1613 = vpack.c.b16 %v1608, %v1607
        %v1614 = vpack.c.b16 %v1610, %v1609
        %1619 = vmatprep.subr.bf16.mxu0 0
        %1620 = vmatpush1.bf16.msra.mxu0 0
        %1621 = vmatprep.subr.bf16.mxu0 0
        %1622 = vmatpush1.bf16.msra.mxu0 0
        %1623 = vmatprep.subr.bf16.mxu0 0
        %1624 = vmatpush1.bf16.msra.mxu0 0
        %1625 = vmatprep.subr.bf16.mxu0 0
        %1626 = vmatpush1.bf16.msra.mxu0 0
        %1627 = vmatprep.subr.bf16.mxu0 0
        %1628 = vmatpush1.bf16.msra.mxu0 %v1614
        %1629 = vmatprep.subr.bf16.mxu0 0
        %1630 = vmatpush1.bf16.msra.mxu0 %v1613
        %1631 = vmatprep.subr.bf16.mxu0 0
        %1632 = vmatpush1.bf16.msra.mxu0 %v1612
        %1633 = vmatprep.subr.bf16.mxu0 0
        %1634 = vmatpush1.bf16.msra.mxu0 %v1611
        %1635 = vmatprep.subr.bf16.mxu0 0
        %1636 = vmatpush2.bf16.msra.mxu0 0
        %1637 = vmatprep.subr.bf16.mxu0 0
        %1638 = vmatpush2.bf16.msra.mxu0 0
        %1639 = vmatprep.subr.bf16.mxu0 0
        %1640 = vmatpush2.bf16.msra.mxu0 0
        %1641 = vmatprep.subr.bf16.mxu0 0
        %1642 = vmatpush2.bf16.msra.mxu0 0
        %1643 = vmatprep.subr.bf16.mxu0 0
        %1644 = vmatpush2.bf16.msra.mxu0 0
        %1645 = vmatprep.subr.bf16.mxu0 0
        %1646 = vmatpush2.bf16.msra.mxu0 0
        %1647 = vmatprep.subr.bf16.mxu0 0
        %1648 = vmatpush2.bf16.msra.mxu0 0
        %1649 = vmatprep.subr.bf16.mxu0 0
        %1650 = vmatpush2.bf16.msra.mxu0 0
        %1651 = vmatprep.mubr.bf16.mxu0 0
        %1652 = vmatmul.mubr.bf16.gmra.mxu0 %v577
        %v1653 = vpop.f32.mrf.mxu0
        %v1654 = vadd.f32 0.0, %v1653
        %v1655 = vpop.f32.mrf.mxu0
        %v1656 = vpop.f32.mrf.mxu0
        %v1657 = vadd.f32 0.0, %v1656
        %v1658 = vpop.f32.mrf.mxu0
        %1659 = vdwg.mxu0
        %v1668 = vunpack.c.l.b16 %v528
        %v1669 = vunpack.c.l.b16 %v529
        %v1670 = vunpack.c.l.b16 %v530
        %v1671 = vunpack.c.l.b16 %v531
        %v1672 = vunpack.c.l.b16 %v532
        %v1673 = vunpack.c.l.b16 %v533
        %v1674 = vunpack.c.l.b16 %v534
        %v1675 = vunpack.c.l.b16 %v535
        %v1676 = vpack.c.b16 %v1669, %v1668
        %v1677 = vpack.c.b16 %v1671, %v1670
        %v1678 = vpack.c.b16 %v1673, %v1672
        %v1679 = vpack.c.b16 %v1675, %v1674
        %1684 = vmatprep.subr.bf16.mxu0 0
        %1685 = vmatpush1.bf16.msra.mxu0 0
        %1686 = vmatprep.subr.bf16.mxu0 0
        %1687 = vmatpush1.bf16.msra.mxu0 0
        %1688 = vmatprep.subr.bf16.mxu0 0
        %1689 = vmatpush1.bf16.msra.mxu0 0
        %1690 = vmatprep.subr.bf16.mxu0 0
        %1691 = vmatpush1.bf16.msra.mxu0 0
        %1692 = vmatprep.subr.bf16.mxu0 0
        %1693 = vmatpush1.bf16.msra.mxu0 %v1679
        %1694 = vmatprep.subr.bf16.mxu0 0
        %1695 = vmatpush1.bf16.msra.mxu0 %v1678
        %1696 = vmatprep.subr.bf16.mxu0 0
        %1697 = vmatpush1.bf16.msra.mxu0 %v1677
        %1698 = vmatprep.subr.bf16.mxu0 0
        %1699 = vmatpush1.bf16.msra.mxu0 %v1676
        %1700 = vmatprep.subr.bf16.mxu0 0
        %1701 = vmatpush2.bf16.msra.mxu0 0
        %1702 = vmatprep.subr.bf16.mxu0 0
        %1703 = vmatpush2.bf16.msra.mxu0 0
        %1704 = vmatprep.subr.bf16.mxu0 0
        %1705 = vmatpush2.bf16.msra.mxu0 0
        %1706 = vmatprep.subr.bf16.mxu0 0
        %1707 = vmatpush2.bf16.msra.mxu0 0
        %1708 = vmatprep.subr.bf16.mxu0 0
        %1709 = vmatpush2.bf16.msra.mxu0 0
        %1710 = vmatprep.subr.bf16.mxu0 0
        %1711 = vmatpush2.bf16.msra.mxu0 0
        %1712 = vmatprep.subr.bf16.mxu0 0
        %1713 = vmatpush2.bf16.msra.mxu0 0
        %1714 = vmatprep.subr.bf16.mxu0 0
        %1715 = vmatpush2.bf16.msra.mxu0 0
        %1716 = vmatprep.mubr.bf16.mxu0 0
        %1717 = vmatmul.mubr.bf16.gmra.mxu0 %v577
        %v1718 = vpop.f32.mrf.mxu0
        %v1719 = vadd.f32 0.0, %v1718
        %v1720 = vpop.f32.mrf.mxu0
        %v1721 = vpop.f32.mrf.mxu0
        %v1722 = vadd.f32 0.0, %v1721
        %v1723 = vpop.f32.mrf.mxu0
        %1724 = vdwg.mxu0
        %v1733 = vunpack.c.l.b16 %v536
        %v1734 = vunpack.c.l.b16 %v537
        %v1735 = vunpack.c.l.b16 %v538
        %v1736 = vunpack.c.l.b16 %v539
        %v1737 = vunpack.c.l.b16 %v540
        %v1738 = vunpack.c.l.b16 %v541
        %v1739 = vunpack.c.l.b16 %v542
        %v1740 = vunpack.c.l.b16 %v543
        %v1741 = vpack.c.b16 %v1734, %v1733
        %v1742 = vpack.c.b16 %v1736, %v1735
        %v1743 = vpack.c.b16 %v1738, %v1737
        %v1744 = vpack.c.b16 %v1740, %v1739
        %1749 = vmatprep.subr.bf16.mxu0 0
        %1750 = vmatpush1.bf16.msra.mxu0 0
        %1751 = vmatprep.subr.bf16.mxu0 0
        %1752 = vmatpush1.bf16.msra.mxu0 0
        %1753 = vmatprep.subr.bf16.mxu0 0
        %1754 = vmatpush1.bf16.msra.mxu0 0
        %1755 = vmatprep.subr.bf16.mxu0 0
        %1756 = vmatpush1.bf16.msra.mxu0 0
        %1757 = vmatprep.subr.bf16.mxu0 0
        %1758 = vmatpush1.bf16.msra.mxu0 %v1744
        %1759 = vmatprep.subr.bf16.mxu0 0
        %1760 = vmatpush1.bf16.msra.mxu0 %v1743
        %1761 = vmatprep.subr.bf16.mxu0 0
        %1762 = vmatpush1.bf16.msra.mxu0 %v1742
        %1763 = vmatprep.subr.bf16.mxu0 0
        %1764 = vmatpush1.bf16.msra.mxu0 %v1741
        %1765 = vmatprep.subr.bf16.mxu0 0
        %1766 = vmatpush2.bf16.msra.mxu0 0
        %1767 = vmatprep.subr.bf16.mxu0 0
        %1768 = vmatpush2.bf16.msra.mxu0 0
        %1769 = vmatprep.subr.bf16.mxu0 0
        %1770 = vmatpush2.bf16.msra.mxu0 0
        %1771 = vmatprep.subr.bf16.mxu0 0
        %1772 = vmatpush2.bf16.msra.mxu0 0
        %1773 = vmatprep.subr.bf16.mxu0 0
        %1774 = vmatpush2.bf16.msra.mxu0 0
        %1775 = vmatprep.subr.bf16.mxu0 0
        %1776 = vmatpush2.bf16.msra.mxu0 0
        %1777 = vmatprep.subr.bf16.mxu0 0
        %1778 = vmatpush2.bf16.msra.mxu0 0
        %1779 = vmatprep.subr.bf16.mxu0 0
        %1780 = vmatpush2.bf16.msra.mxu0 0
        %1781 = vmatprep.mubr.bf16.mxu0 0
        %1782 = vmatmul.mubr.bf16.gmra.mxu0 %v577
        %v1783 = vpop.f32.mrf.mxu0
        %v1784 = vadd.f32 0.0, %v1783
        %v1785 = vpop.f32.mrf.mxu0
        %v1786 = vpop.f32.mrf.mxu0
        %v1787 = vadd.f32 0.0, %v1786
        %v1788 = vpop.f32.mrf.mxu0
        %1789 = vdwg.mxu0
        %v1798 = vunpack.c.l.b16 %v544
        %v1799 = vunpack.c.l.b16 %v545
        %v1800 = vunpack.c.l.b16 %v546
        %v1801 = vunpack.c.l.b16 %v547
        %v1802 = vunpack.c.l.b16 %v548
        %v1803 = vunpack.c.l.b16 %v549
        %v1804 = vunpack.c.l.b16 %v550
        %v1805 = vunpack.c.l.b16 %v551
        %v1806 = vpack.c.b16 %v1799, %v1798
        %v1807 = vpack.c.b16 %v1801, %v1800
        %v1808 = vpack.c.b16 %v1803, %v1802
        %v1809 = vpack.c.b16 %v1805, %v1804
        %1814 = vmatprep.subr.bf16.mxu0 0
        %1815 = vmatpush1.bf16.msra.mxu0 0
        %1816 = vmatprep.subr.bf16.mxu0 0
        %1817 = vmatpush1.bf16.msra.mxu0 0
        %1818 = vmatprep.subr.bf16.mxu0 0
        %1819 = vmatpush1.bf16.msra.mxu0 0
        %1820 = vmatprep.subr.bf16.mxu0 0
        %1821 = vmatpush1.bf16.msra.mxu0 0
        %1822 = vmatprep.subr.bf16.mxu0 0
        %1823 = vmatpush1.bf16.msra.mxu0 %v1809
        %1824 = vmatprep.subr.bf16.mxu0 0
        %1825 = vmatpush1.bf16.msra.mxu0 %v1808
        %1826 = vmatprep.subr.bf16.mxu0 0
        %1827 = vmatpush1.bf16.msra.mxu0 %v1807
        %1828 = vmatprep.subr.bf16.mxu0 0
        %1829 = vmatpush1.bf16.msra.mxu0 %v1806
        %1830 = vmatprep.subr.bf16.mxu0 0
        %1831 = vmatpush2.bf16.msra.mxu0 0
        %1832 = vmatprep.subr.bf16.mxu0 0
        %1833 = vmatpush2.bf16.msra.mxu0 0
        %1834 = vmatprep.subr.bf16.mxu0 0
        %1835 = vmatpush2.bf16.msra.mxu0 0
        %1836 = vmatprep.subr.bf16.mxu0 0
        %1837 = vmatpush2.bf16.msra.mxu0 0
        %1838 = vmatprep.subr.bf16.mxu0 0
        %1839 = vmatpush2.bf16.msra.mxu0 0
        %1840 = vmatprep.subr.bf16.mxu0 0
        %1841 = vmatpush2.bf16.msra.mxu0 0
        %1842 = vmatprep.subr.bf16.mxu0 0
        %1843 = vmatpush2.bf16.msra.mxu0 0
        %1844 = vmatprep.subr.bf16.mxu0 0
        %1845 = vmatpush2.bf16.msra.mxu0 0
        %1846 = vmatprep.mubr.bf16.mxu0 0
        %1847 = vmatmul.mubr.bf16.gmra.mxu0 %v577
        %v1848 = vpop.f32.mrf.mxu0
        %v1849 = vadd.f32 0.0, %v1848
        %v1850 = vpop.f32.mrf.mxu0
        %v1851 = vpop.f32.mrf.mxu0
        %v1852 = vadd.f32 0.0, %v1851
        %v1853 = vpop.f32.mrf.mxu0
        %1854 = vdwg.mxu0
        %v1855 = vld [vmem:[%s4] sm:$0xff]
        %v1856 = vld [vmem:[%s4 + $0x8] sm:$0xff]
        %v1857 = vld [vmem:[%s5] sm:$0xff]
        %v1858 = vld [vmem:[%s5 + $0x8] sm:$0xff]
        %v1859 = vmul.f32 %v614, %v1855
        %v1860 = vmul.f32 %v617, %v1856
        %v1861 = vmul.f32 %v679, %v1855
        %v1862 = vmul.f32 %v682, %v1856
        %v1863 = vmul.f32 %v744, %v1855
        %v1864 = vmul.f32 %v747, %v1856
        %v1865 = vmul.f32 %v809, %v1855
        %v1866 = vmul.f32 %v812, %v1856
        %v1867 = vmul.f32 %v874, %v1855
        %v1868 = vmul.f32 %v877, %v1856
        %v1869 = vmul.f32 %v939, %v1855
        %v1870 = vmul.f32 %v942, %v1856
        %v1871 = vmul.f32 %v1004, %v1855
        %v1872 = vmul.f32 %v1007, %v1856
        %v1873 = vmul.f32 %v1069, %v1855
        %v1874 = vmul.f32 %v1072, %v1856
        %v1875 = vmul.f32 %v1134, %v1857
        %v1876 = vmul.f32 %v1137, %v1858
        %v1877 = vmul.f32 %v1199, %v1857
        %v1878 = vmul.f32 %v1202, %v1858
        %v1879 = vmul.f32 %v1264, %v1857
        %v1880 = vmul.f32 %v1267, %v1858
        %v1881 = vmul.f32 %v1329, %v1857
        %v1882 = vmul.f32 %v1332, %v1858
        %v1883 = vmul.f32 %v1394, %v1857
        %v1884 = vmul.f32 %v1397, %v1858
        %v1885 = vmul.f32 %v1459, %v1857
        %v1886 = vmul.f32 %v1462, %v1858
        %v1887 = vmul.f32 %v1524, %v1857
        %v1888 = vmul.f32 %v1527, %v1858
        %v1889 = vmul.f32 %v1589, %v1857
        %v1890 = vmul.f32 %v1592, %v1858
        %v1891 = vadd.f32 %v1859, %v1875
        %v1892 = vadd.f32 %v1860, %v1876
        %v1893 = vadd.f32 %v1861, %v1877
        %v1894 = vadd.f32 %v1862, %v1878
        %v1895 = vadd.f32 %v1863, %v1879
        %v1896 = vadd.f32 %v1864, %v1880
        %v1897 = vadd.f32 %v1865, %v1881
        %v1898 = vadd.f32 %v1866, %v1882
        %v1899 = vadd.f32 %v1867, %v1883
        %v1900 = vadd.f32 %v1868, %v1884
        %v1901 = vadd.f32 %v1869, %v1885
        %v1902 = vadd.f32 %v1870, %v1886
        %v1903 = vadd.f32 %v1871, %v1887
        %v1904 = vadd.f32 %v1872, %v1888
        %v1905 = vadd.f32 %v1873, %v1889
        %v1906 = vadd.f32 %v1874, %v1890
        %v1907 = vpack.c.bf16 %v1892, %v1891
        %v1908 = vpack.c.bf16 %v1894, %v1893
        %v1909 = vpack.c.bf16 %v1896, %v1895
        %v1910 = vpack.c.bf16 %v1898, %v1897
        %v1911 = vpack.c.bf16 %v1900, %v1899
        %v1912 = vpack.c.bf16 %v1902, %v1901
        %v1913 = vpack.c.bf16 %v1904, %v1903
        %v1914 = vpack.c.bf16 %v1906, %v1905
        %vm1915 = vcmask 130048
        %v1917 = vsel %vm1915, %v1907, 0
        %v1920 = vsel %vm1915, %v1911, 0
        %1922 = vmatprep.subr.bf16.mxu0 0
        %1923 = vmatpush1.bf16.xpose.msra.mxu0 0
        %1924 = vmatprep.subr.bf16.mxu0 0
        %1925 = vmatpush1.bf16.xpose.msra.mxu0 0
        %1926 = vmatprep.subr.bf16.mxu0 0
        %1927 = vmatpush1.bf16.xpose.msra.mxu0 0
        %1928 = vmatprep.subr.bf16.mxu0 0
        %1929 = vmatpush1.bf16.xpose.msra.mxu0 0
        %1930 = vmatprep.subr.bf16.mxu0 0
        %1931 = vmatpush1.bf16.xpose.msra.mxu0 0
        %1932 = vmatprep.subr.bf16.mxu0 0
        %1933 = vmatpush1.bf16.xpose.msra.mxu0 0
        %1934 = vmatprep.subr.bf16.mxu0 0
        %1935 = vmatpush1.bf16.xpose.msra.mxu0 0
        %1936 = vmatprep.subr.bf16.mxu0 0
        %1937 = vmatpush1.bf16.xpose.msra.mxu0 %v1920
        %1938 = vmatprep.subr.bf16.mxu0 0
        %1939 = vmatpush2.bf16.xpose.msra.mxu0 0
        %1940 = vmatprep.subr.bf16.mxu0 0
        %1941 = vmatpush2.bf16.xpose.msra.mxu0 0
        %1942 = vmatprep.subr.bf16.mxu0 0
        %1943 = vmatpush2.bf16.xpose.msra.mxu0 0
        %1944 = vmatprep.subr.bf16.mxu0 0
        %1945 = vmatpush2.bf16.xpose.msra.mxu0 0
        %1946 = vmatprep.subr.bf16.mxu0 0
        %1947 = vmatpush2.bf16.xpose.msra.mxu0 0
        %1948 = vmatprep.subr.bf16.mxu0 0
        %1949 = vmatpush2.bf16.xpose.msra.mxu0 0
        %1950 = vmatprep.subr.bf16.mxu0 0
        %1951 = vmatpush2.bf16.xpose.msra.mxu0 0
        %1952 = vmatprep.subr.bf16.mxu0 0
        %1953 = vmatpush2.bf16.xpose.msra.mxu0 0
        %1954 = vmatprep.mubr.bf16.mxu0 0
        %1955 = vmatmul.mubr.bf16.gmra.mxu0 %v1917
        %v1956 = vpop.f32.mrf.mxu0
        %v1957 = vadd.f32 0.0, %v1956
        %v1958 = vpop.f32.mrf.mxu0
        %v1959 = vpop.f32.mrf.mxu0
        %v1960 = vadd.f32 0.0, %v1959
        %v1961 = vpop.f32.mrf.mxu0
        %1962 = vdwg.mxu0
        %v1964 = vsel %vm1915, %v1908, 0
        %v1967 = vsel %vm1915, %v1912, 0
        %1969 = vmatprep.subr.bf16.mxu0 0
        %1970 = vmatpush1.bf16.xpose.msra.mxu0 0
        %1971 = vmatprep.subr.bf16.mxu0 0
        %1972 = vmatpush1.bf16.xpose.msra.mxu0 0
        %1973 = vmatprep.subr.bf16.mxu0 0
        %1974 = vmatpush1.bf16.xpose.msra.mxu0 0
        %1975 = vmatprep.subr.bf16.mxu0 0
        %1976 = vmatpush1.bf16.xpose.msra.mxu0 0
        %1977 = vmatprep.subr.bf16.mxu0 0
        %1978 = vmatpush1.bf16.xpose.msra.mxu0 0
        %1979 = vmatprep.subr.bf16.mxu0 0
        %1980 = vmatpush1.bf16.xpose.msra.mxu0 0
        %1981 = vmatprep.subr.bf16.mxu0 0
        %1982 = vmatpush1.bf16.xpose.msra.mxu0 0
        %1983 = vmatprep.subr.bf16.mxu0 0
        %1984 = vmatpush1.bf16.xpose.msra.mxu0 %v1967
        %1985 = vmatprep.subr.bf16.mxu0 0
        %1986 = vmatpush2.bf16.xpose.msra.mxu0 0
        %1987 = vmatprep.subr.bf16.mxu0 0
        %1988 = vmatpush2.bf16.xpose.msra.mxu0 0
        %1989 = vmatprep.subr.bf16.mxu0 0
        %1990 = vmatpush2.bf16.xpose.msra.mxu0 0
        %1991 = vmatprep.subr.bf16.mxu0 0
        %1992 = vmatpush2.bf16.xpose.msra.mxu0 0
        %1993 = vmatprep.subr.bf16.mxu0 0
        %1994 = vmatpush2.bf16.xpose.msra.mxu0 0
        %1995 = vmatprep.subr.bf16.mxu0 0
        %1996 = vmatpush2.bf16.xpose.msra.mxu0 0
        %1997 = vmatprep.subr.bf16.mxu0 0
        %1998 = vmatpush2.bf16.xpose.msra.mxu0 0
        %1999 = vmatprep.subr.bf16.mxu0 0
        %2000 = vmatpush2.bf16.xpose.msra.mxu0 0
        %2001 = vmatprep.mubr.bf16.mxu0 0
        %2002 = vmatmul.mubr.bf16.gmra.mxu0 %v1964
        %v2003 = vpop.f32.mrf.mxu0
        %v2004 = vadd.f32 0.0, %v2003
        %v2005 = vpop.f32.mrf.mxu0
        %v2006 = vpop.f32.mrf.mxu0
        %v2007 = vadd.f32 0.0, %v2006
        %v2008 = vpop.f32.mrf.mxu0
        %2009 = vdwg.mxu0
        %v2011 = vsel %vm1915, %v1909, 0
        %v2014 = vsel %vm1915, %v1913, 0
        %2016 = vmatprep.subr.bf16.mxu0 0
        %2017 = vmatpush1.bf16.xpose.msra.mxu0 0
        %2018 = vmatprep.subr.bf16.mxu0 0
        %2019 = vmatpush1.bf16.xpose.msra.mxu0 0
        %2020 = vmatprep.subr.bf16.mxu0 0
        %2021 = vmatpush1.bf16.xpose.msra.mxu0 0
        %2022 = vmatprep.subr.bf16.mxu0 0
        %2023 = vmatpush1.bf16.xpose.msra.mxu0 0
        %2024 = vmatprep.subr.bf16.mxu0 0
        %2025 = vmatpush1.bf16.xpose.msra.mxu0 0
        %2026 = vmatprep.subr.bf16.mxu0 0
        %2027 = vmatpush1.bf16.xpose.msra.mxu0 0
        %2028 = vmatprep.subr.bf16.mxu0 0
        %2029 = vmatpush1.bf16.xpose.msra.mxu0 0
        %2030 = vmatprep.subr.bf16.mxu0 0
        %2031 = vmatpush1.bf16.xpose.msra.mxu0 %v2014
        %2032 = vmatprep.subr.bf16.mxu0 0
        %2033 = vmatpush2.bf16.xpose.msra.mxu0 0
        %2034 = vmatprep.subr.bf16.mxu0 0
        %2035 = vmatpush2.bf16.xpose.msra.mxu0 0
        %2036 = vmatprep.subr.bf16.mxu0 0
        %2037 = vmatpush2.bf16.xpose.msra.mxu0 0
        %2038 = vmatprep.subr.bf16.mxu0 0
        %2039 = vmatpush2.bf16.xpose.msra.mxu0 0
        %2040 = vmatprep.subr.bf16.mxu0 0
        %2041 = vmatpush2.bf16.xpose.msra.mxu0 0
        %2042 = vmatprep.subr.bf16.mxu0 0
        %2043 = vmatpush2.bf16.xpose.msra.mxu0 0
        %2044 = vmatprep.subr.bf16.mxu0 0
        %2045 = vmatpush2.bf16.xpose.msra.mxu0 0
        %2046 = vmatprep.subr.bf16.mxu0 0
        %2047 = vmatpush2.bf16.xpose.msra.mxu0 0
        %2048 = vmatprep.mubr.bf16.mxu0 0
        %2049 = vmatmul.mubr.bf16.gmra.mxu0 %v2011
        %v2050 = vpop.f32.mrf.mxu0
        %v2051 = vadd.f32 0.0, %v2050
        %v2052 = vpop.f32.mrf.mxu0
        %v2053 = vpop.f32.mrf.mxu0
        %v2054 = vadd.f32 0.0, %v2053
        %v2055 = vpop.f32.mrf.mxu0
        %2056 = vdwg.mxu0
        %v2058 = vsel %vm1915, %v1910, 0
        %v2061 = vsel %vm1915, %v1914, 0
        %2063 = vmatprep.subr.bf16.mxu0 0
        %2064 = vmatpush1.bf16.xpose.msra.mxu0 0
        %2065 = vmatprep.subr.bf16.mxu0 0
        %2066 = vmatpush1.bf16.xpose.msra.mxu0 0
        %2067 = vmatprep.subr.bf16.mxu0 0
        %2068 = vmatpush1.bf16.xpose.msra.mxu0 0
        %2069 = vmatprep.subr.bf16.mxu0 0
        %2070 = vmatpush1.bf16.xpose.msra.mxu0 0
        %2071 = vmatprep.subr.bf16.mxu0 0
        %2072 = vmatpush1.bf16.xpose.msra.mxu0 0
        %2073 = vmatprep.subr.bf16.mxu0 0
        %2074 = vmatpush1.bf16.xpose.msra.mxu0 0
        %2075 = vmatprep.subr.bf16.mxu0 0
        %2076 = vmatpush1.bf16.xpose.msra.mxu0 0
        %2077 = vmatprep.subr.bf16.mxu0 0
        %2078 = vmatpush1.bf16.xpose.msra.mxu0 %v2061
        %2079 = vmatprep.subr.bf16.mxu0 0
        %2080 = vmatpush2.bf16.xpose.msra.mxu0 0
        %2081 = vmatprep.subr.bf16.mxu0 0
        %2082 = vmatpush2.bf16.xpose.msra.mxu0 0
        %2083 = vmatprep.subr.bf16.mxu0 0
        %2084 = vmatpush2.bf16.xpose.msra.mxu0 0
        %2085 = vmatprep.subr.bf16.mxu0 0
        %2086 = vmatpush2.bf16.xpose.msra.mxu0 0
        %2087 = vmatprep.subr.bf16.mxu0 0
        %2088 = vmatpush2.bf16.xpose.msra.mxu0 0
        %2089 = vmatprep.subr.bf16.mxu0 0
        %2090 = vmatpush2.bf16.xpose.msra.mxu0 0
        %2091 = vmatprep.subr.bf16.mxu0 0
        %2092 = vmatpush2.bf16.xpose.msra.mxu0 0
        %2093 = vmatprep.subr.bf16.mxu0 0
        %2094 = vmatpush2.bf16.xpose.msra.mxu0 0
        %2095 = vmatprep.mubr.bf16.mxu0 0
        %2096 = vmatmul.mubr.bf16.gmra.mxu0 %v2058
        %v2097 = vpop.f32.mrf.mxu0
        %v2098 = vadd.f32 0.0, %v2097
        %v2099 = vpop.f32.mrf.mxu0
        %v2100 = vpop.f32.mrf.mxu0
        %v2101 = vadd.f32 0.0, %v2100
        %v2102 = vpop.f32.mrf.mxu0
        %2103 = vdwg.mxu0
        %v2104 = vmul.f32 %v1957, 0.25
        %v2105 = vmul.f32 %v1960, 0.25
        %v2106 = vmul.f32 %v2004, 0.25
        %v2107 = vmul.f32 %v2007, 0.25
        %v2108 = vmul.f32 %v2051, 0.25
        %v2109 = vmul.f32 %v2054, 0.25
        %v2110 = vmul.f32 %v2098, 0.25
        %v2111 = vmul.f32 %v2101, 0.25
        %v2112 = vlaneseq
        %v2113 = vshrl.u32 %v2112, 7
        %v2114 = vadd.s32 %v2113, 8
        %v2115 = vlaneseq
        %v2116 = vand.u32 %v2115, 127
        %vm2117 = vcmp.le.s32.totalorder %v2116, %v2113
        %vm2118 = vcmp.le.s32.totalorder %v2116, %v2114
        %v2119 = vsel %vm2117, 1, 0
        %v2120 = vsel %vm2118, 1, 0
        %vm2121 = vcmp.eq.s32.totalorder %v2119, 1
        %vm2122 = vcmp.eq.s32.totalorder %v2120, 1
        %v2123 = vsel %vm2121, %v2104, -1e+30
        %v2124 = vsel %vm2122, %v2105, -1e+30
        %v2125 = vsel %vm2121, %v2106, -1e+30
        %v2126 = vsel %vm2122, %v2107, -1e+30
        %v2127 = vsel %vm2121, %v2108, -1e+30
        %v2128 = vsel %vm2122, %v2109, -1e+30
        %v2129 = vsel %vm2121, %v2110, -1e+30
        %v2130 = vsel %vm2122, %v2111, -1e+30
        %v2131 = vsel %vm1915, %v2123, -inf
        %2132 = vmax.xlane.f32.xlu0 %v2131
        %v2133 = vpop.xlane.xlu0 %2132
        %v2134 = vsel %vm1915, %v2124, -inf
        %2135 = vmax.xlane.f32.xlu0 %v2134
        %v2136 = vpop.xlane.xlu0 %2135
        %v2137 = vsel %vm1915, %v2125, -inf
        %2138 = vmax.xlane.f32.xlu0 %v2137
        %v2139 = vpop.xlane.xlu0 %2138
        %v2140 = vsel %vm1915, %v2126, -inf
        %2141 = vmax.xlane.f32.xlu0 %v2140
        %v2142 = vpop.xlane.xlu0 %2141
        %v2143 = vsel %vm1915, %v2127, -inf
        %2144 = vmax.xlane.f32.xlu0 %v2143
        %v2145 = vpop.xlane.xlu0 %2144
        %v2146 = vsel %vm1915, %v2128, -inf
        %2147 = vmax.xlane.f32.xlu0 %v2146
        %v2148 = vpop.xlane.xlu0 %2147
        %v2149 = vsel %vm1915, %v2129, -inf
        %2150 = vmax.xlane.f32.xlu0 %v2149
        %v2151 = vpop.xlane.xlu0 %2150
        %v2152 = vsel %vm1915, %v2130, -inf
        %2153 = vmax.xlane.f32.xlu0 %v2152
        %v2154 = vpop.xlane.xlu0 %2153
        %v2155 = vsub.f32 %v2123, %v2133
        %v2156 = vsub.f32 %v2124, %v2136
        %v2157 = vsub.f32 %v2125, %v2139
        %v2158 = vsub.f32 %v2126, %v2142
        %v2159 = vsub.f32 %v2127, %v2145
        %v2160 = vsub.f32 %v2128, %v2148
        %v2161 = vsub.f32 %v2129, %v2151
        %v2162 = vsub.f32 %v2130, %v2154
        %v2163 = vmul.f32 %v2155, 1.442695
        %v2164 = vpow.pop %v2163
        %v2165 = vmul.f32 %v2156, 1.442695
        %v2166 = vpow.pop %v2165
        %v2167 = vmul.f32 %v2157, 1.442695
        %v2168 = vpow.pop %v2167
        %v2169 = vmul.f32 %v2158, 1.442695
        %v2170 = vpow.pop %v2169
        %v2171 = vmul.f32 %v2159, 1.442695
        %v2172 = vpow.pop %v2171
        %v2173 = vmul.f32 %v2160, 1.442695
        %v2174 = vpow.pop %v2173
        %v2175 = vmul.f32 %v2161, 1.442695
        %v2176 = vpow.pop %v2175
        %v2177 = vmul.f32 %v2162, 1.442695
        %v2178 = vpow.pop %v2177
        %v2179 = vsel %vm1915, %v2164, 0.0
        %2180 = vadd.xlane.f32.xlu0 %v2179
        %v2181 = vpop.xlane.xlu0 %2180
        %v2182 = vsel %vm1915, %v2166, 0.0
        %2183 = vadd.xlane.f32.xlu0 %v2182
        %v2184 = vpop.xlane.xlu0 %2183
        %v2185 = vsel %vm1915, %v2168, 0.0
        %2186 = vadd.xlane.f32.xlu0 %v2185
        %v2187 = vpop.xlane.xlu0 %2186
        %v2188 = vsel %vm1915, %v2170, 0.0
        %2189 = vadd.xlane.f32.xlu0 %v2188
        %v2190 = vpop.xlane.xlu0 %2189
        %v2191 = vsel %vm1915, %v2172, 0.0
        %2192 = vadd.xlane.f32.xlu0 %v2191
        %v2193 = vpop.xlane.xlu0 %2192
        %v2194 = vsel %vm1915, %v2174, 0.0
        %2195 = vadd.xlane.f32.xlu0 %v2194
        %v2196 = vpop.xlane.xlu0 %2195
        %v2197 = vsel %vm1915, %v2176, 0.0
        %2198 = vadd.xlane.f32.xlu0 %v2197
        %v2199 = vpop.xlane.xlu0 %2198
        %v2200 = vsel %vm1915, %v2178, 0.0
        %2201 = vadd.xlane.f32.xlu0 %v2200
        %v2202 = vpop.xlane.xlu0 %2201
        %v2203 = vrcp.pop %v2181
        %v2204 = vrcp.pop %v2184
        %v2205 = vrcp.pop %v2187
        %v2206 = vrcp.pop %v2190
        %v2207 = vrcp.pop %v2193
        %v2208 = vrcp.pop %v2196
        %v2209 = vrcp.pop %v2199
        %v2210 = vrcp.pop %v2202
        %v2211 = vmul.f32 %v2164, %v2203
        %v2212 = vmul.f32 %v2166, %v2204
        %v2213 = vmul.f32 %v2168, %v2205
        %v2214 = vmul.f32 %v2170, %v2206
        %v2215 = vmul.f32 %v2172, %v2207
        %v2216 = vmul.f32 %v2174, %v2208
        %v2217 = vmul.f32 %v2176, %v2209
        %v2218 = vmul.f32 %v2178, %v2210
        %v2219 = vpack.c.bf16 %v2212, %v2211
        %v2220 = vpack.c.bf16 %v2214, %v2213
        %v2221 = vpack.c.bf16 %v2216, %v2215
        %v2222 = vpack.c.bf16 %v2218, %v2217
        %v2223 = vpack.c.bf16 %v1657, %v1654
        %v2224 = vpack.c.bf16 %v1722, %v1719
        %v2225 = vpack.c.bf16 %v1787, %v1784
        %v2226 = vpack.c.bf16 %v1852, %v1849
        %v2228 = vsel %vm1915, %v2219, 0
        %2230 = vmatprep.subr.bf16.mxu0 0
        %2231 = vmatpush1.bf16.msra.mxu0 0
        %2232 = vmatprep.subr.bf16.mxu0 0
        %2233 = vmatpush1.bf16.msra.mxu0 0
        %2234 = vmatprep.subr.bf16.mxu0 0
        %2235 = vmatpush1.bf16.msra.mxu0 0
        %2236 = vmatprep.subr.bf16.mxu0 0
        %2237 = vmatpush1.bf16.msra.mxu0 0
        %2238 = vmatprep.subr.bf16.mxu0 0
        %2239 = vmatpush1.bf16.msra.mxu0 0
        %2240 = vmatprep.subr.bf16.mxu0 0
        %2241 = vmatpush1.bf16.msra.mxu0 0
        %2242 = vmatprep.subr.bf16.mxu0 0
        %2243 = vmatpush1.bf16.msra.mxu0 0
        %2244 = vmatprep.subr.bf16.mxu0 0
        %2245 = vmatpush1.bf16.msra.mxu0 %v2223
        %2246 = vmatprep.subr.bf16.mxu0 0
        %2247 = vmatpush2.bf16.msra.mxu0 0
        %2248 = vmatprep.subr.bf16.mxu0 0
        %2249 = vmatpush2.bf16.msra.mxu0 0
        %2250 = vmatprep.subr.bf16.mxu0 0
        %2251 = vmatpush2.bf16.msra.mxu0 0
        %2252 = vmatprep.subr.bf16.mxu0 0
        %2253 = vmatpush2.bf16.msra.mxu0 0
        %2254 = vmatprep.subr.bf16.mxu0 0
        %2255 = vmatpush2.bf16.msra.mxu0 0
        %2256 = vmatprep.subr.bf16.mxu0 0
        %2257 = vmatpush2.bf16.msra.mxu0 0
        %2258 = vmatprep.subr.bf16.mxu0 0
        %2259 = vmatpush2.bf16.msra.mxu0 0
        %2260 = vmatprep.subr.bf16.mxu0 0
        %2261 = vmatpush2.bf16.msra.mxu0 0
        %2262 = vmatprep.mubr.bf16.mxu0 0
        %2263 = vmatmul.mubr.bf16.gmra.mxu0 %v2228
        %v2264 = vpop.f32.mrf.mxu0
        %v2265 = vadd.f32 0.0, %v2264
        %v2266 = vpop.f32.mrf.mxu0
        %v2267 = vpop.f32.mrf.mxu0
        %v2268 = vadd.f32 0.0, %v2267
        %v2269 = vpop.f32.mrf.mxu0
        %2270 = vdwg.mxu0
        %v2272 = vsel %vm1915, %v2220, 0
        %2274 = vmatprep.subr.bf16.mxu0 0
        %2275 = vmatpush1.bf16.msra.mxu0 0
        %2276 = vmatprep.subr.bf16.mxu0 0
        %2277 = vmatpush1.bf16.msra.mxu0 0
        %2278 = vmatprep.subr.bf16.mxu0 0
        %2279 = vmatpush1.bf16.msra.mxu0 0
        %2280 = vmatprep.subr.bf16.mxu0 0
        %2281 = vmatpush1.bf16.msra.mxu0 0
        %2282 = vmatprep.subr.bf16.mxu0 0
        %2283 = vmatpush1.bf16.msra.mxu0 0
        %2284 = vmatprep.subr.bf16.mxu0 0
        %2285 = vmatpush1.bf16.msra.mxu0 0
        %2286 = vmatprep.subr.bf16.mxu0 0
        %2287 = vmatpush1.bf16.msra.mxu0 0
        %2288 = vmatprep.subr.bf16.mxu0 0
        %2289 = vmatpush1.bf16.msra.mxu0 %v2224
        %2290 = vmatprep.subr.bf16.mxu0 0
        %2291 = vmatpush2.bf16.msra.mxu0 0
        %2292 = vmatprep.subr.bf16.mxu0 0
        %2293 = vmatpush2.bf16.msra.mxu0 0
        %2294 = vmatprep.subr.bf16.mxu0 0
        %2295 = vmatpush2.bf16.msra.mxu0 0
        %2296 = vmatprep.subr.bf16.mxu0 0
        %2297 = vmatpush2.bf16.msra.mxu0 0
        %2298 = vmatprep.subr.bf16.mxu0 0
        %2299 = vmatpush2.bf16.msra.mxu0 0
        %2300 = vmatprep.subr.bf16.mxu0 0
        %2301 = vmatpush2.bf16.msra.mxu0 0
        %2302 = vmatprep.subr.bf16.mxu0 0
        %2303 = vmatpush2.bf16.msra.mxu0 0
        %2304 = vmatprep.subr.bf16.mxu0 0
        %2305 = vmatpush2.bf16.msra.mxu0 0
        %2306 = vmatprep.mubr.bf16.mxu0 0
        %2307 = vmatmul.mubr.bf16.gmra.mxu0 %v2272
        %v2308 = vpop.f32.mrf.mxu0
        %v2309 = vadd.f32 0.0, %v2308
        %v2310 = vpop.f32.mrf.mxu0
        %v2311 = vpop.f32.mrf.mxu0
        %v2312 = vadd.f32 0.0, %v2311
        %v2313 = vpop.f32.mrf.mxu0
        %2314 = vdwg.mxu0
        %v2316 = vsel %vm1915, %v2221, 0
        %2318 = vmatprep.subr.bf16.mxu0 0
        %2319 = vmatpush1.bf16.msra.mxu0 0
        %2320 = vmatprep.subr.bf16.mxu0 0
        %2321 = vmatpush1.bf16.msra.mxu0 0
        %2322 = vmatprep.subr.bf16.mxu0 0
        %2323 = vmatpush1.bf16.msra.mxu0 0
        %2324 = vmatprep.subr.bf16.mxu0 0
        %2325 = vmatpush1.bf16.msra.mxu0 0
        %2326 = vmatprep.subr.bf16.mxu0 0
        %2327 = vmatpush1.bf16.msra.mxu0 0
        %2328 = vmatprep.subr.bf16.mxu0 0
        %2329 = vmatpush1.bf16.msra.mxu0 0
        %2330 = vmatprep.subr.bf16.mxu0 0
        %2331 = vmatpush1.bf16.msra.mxu0 0
        %2332 = vmatprep.subr.bf16.mxu0 0
        %2333 = vmatpush1.bf16.msra.mxu0 %v2225
        %2334 = vmatprep.subr.bf16.mxu0 0
        %2335 = vmatpush2.bf16.msra.mxu0 0
        %2336 = vmatprep.subr.bf16.mxu0 0
        %2337 = vmatpush2.bf16.msra.mxu0 0
        %2338 = vmatprep.subr.bf16.mxu0 0
        %2339 = vmatpush2.bf16.msra.mxu0 0
        %2340 = vmatprep.subr.bf16.mxu0 0
        %2341 = vmatpush2.bf16.msra.mxu0 0
        %2342 = vmatprep.subr.bf16.mxu0 0
        %2343 = vmatpush2.bf16.msra.mxu0 0
        %2344 = vmatprep.subr.bf16.mxu0 0
        %2345 = vmatpush2.bf16.msra.mxu0 0
        %2346 = vmatprep.subr.bf16.mxu0 0
        %2347 = vmatpush2.bf16.msra.mxu0 0
        %2348 = vmatprep.subr.bf16.mxu0 0
        %2349 = vmatpush2.bf16.msra.mxu0 0
        %2350 = vmatprep.mubr.bf16.mxu0 0
        %2351 = vmatmul.mubr.bf16.gmra.mxu0 %v2316
        %v2352 = vpop.f32.mrf.mxu0
        %v2353 = vadd.f32 0.0, %v2352
        %v2354 = vpop.f32.mrf.mxu0
        %v2355 = vpop.f32.mrf.mxu0
        %v2356 = vadd.f32 0.0, %v2355
        %v2357 = vpop.f32.mrf.mxu0
        %2358 = vdwg.mxu0
        %v2360 = vsel %vm1915, %v2222, 0
        %2362 = vmatprep.subr.bf16.mxu0 0
        %2363 = vmatpush1.bf16.msra.mxu0 0
        %2364 = vmatprep.subr.bf16.mxu0 0
        %2365 = vmatpush1.bf16.msra.mxu0 0
        %2366 = vmatprep.subr.bf16.mxu0 0
        %2367 = vmatpush1.bf16.msra.mxu0 0
        %2368 = vmatprep.subr.bf16.mxu0 0
        %2369 = vmatpush1.bf16.msra.mxu0 0
        %2370 = vmatprep.subr.bf16.mxu0 0
        %2371 = vmatpush1.bf16.msra.mxu0 0
        %2372 = vmatprep.subr.bf16.mxu0 0
        %2373 = vmatpush1.bf16.msra.mxu0 0
        %2374 = vmatprep.subr.bf16.mxu0 0
        %2375 = vmatpush1.bf16.msra.mxu0 0
        %2376 = vmatprep.subr.bf16.mxu0 0
        %2377 = vmatpush1.bf16.msra.mxu0 %v2226
        %2378 = vmatprep.subr.bf16.mxu0 0
        %2379 = vmatpush2.bf16.msra.mxu0 0
        %2380 = vmatprep.subr.bf16.mxu0 0
        %2381 = vmatpush2.bf16.msra.mxu0 0
        %2382 = vmatprep.subr.bf16.mxu0 0
        %2383 = vmatpush2.bf16.msra.mxu0 0
        %2384 = vmatprep.subr.bf16.mxu0 0
        %2385 = vmatpush2.bf16.msra.mxu0 0
        %2386 = vmatprep.subr.bf16.mxu0 0
        %2387 = vmatpush2.bf16.msra.mxu0 0
        %2388 = vmatprep.subr.bf16.mxu0 0
        %2389 = vmatpush2.bf16.msra.mxu0 0
        %2390 = vmatprep.subr.bf16.mxu0 0
        %2391 = vmatpush2.bf16.msra.mxu0 0
        %2392 = vmatprep.subr.bf16.mxu0 0
        %2393 = vmatpush2.bf16.msra.mxu0 0
        %2394 = vmatprep.mubr.bf16.mxu0 0
        %2395 = vmatmul.mubr.bf16.gmra.mxu0 %v2360
        %v2396 = vpop.f32.mrf.mxu0
        %v2397 = vadd.f32 0.0, %v2396
        %v2398 = vpop.f32.mrf.mxu0
        %v2399 = vpop.f32.mrf.mxu0
        %v2400 = vadd.f32 0.0, %v2399
        %v2401 = vpop.f32.mrf.mxu0
        %2402 = vdwg.mxu0
        %v2403 = vpack.c.bf16 %v2268, %v2265
        %v2404 = vpack.c.bf16 %v2312, %v2309
        %v2405 = vpack.c.bf16 %v2356, %v2353
        %v2406 = vpack.c.bf16 %v2400, %v2397
        %v2407 = vld [vmem:[%s7] sm:$0xf]
        %v2408 = vld [vmem:[%s7 + $0x4] sm:$0xf]
        %v2409 = vld [vmem:[%s7 + $0x8] sm:$0xf]
        %v2410 = vld [vmem:[%s7 + $0xc] sm:$0xf]
        %v2411 = vld [vmem:[%s7 + $0x10] sm:$0xf]
        %v2412 = vld [vmem:[%s7 + $0x14] sm:$0xf]
        %v2413 = vld [vmem:[%s7 + $0x18] sm:$0xf]
        %v2414 = vld [vmem:[%s7 + $0x1c] sm:$0xf]
        %v2417 = vunpack.c.l.b16 %v2407
        %v2418 = vunpack.c.l.b16 %v2408
        %v2419 = vpack.c.b16 %v2418, %v2417
        %v2422 = vsel %vm1915, %v2403, 0
        %2424 = vmatprep.subr.bf16.mxu0 0
        %2425 = vmatpush1.bf16.msra.mxu0 0
        %2426 = vmatprep.subr.bf16.mxu0 0
        %2427 = vmatpush1.bf16.msra.mxu0 0
        %2428 = vmatprep.subr.bf16.mxu0 0
        %2429 = vmatpush1.bf16.msra.mxu0 0
        %2430 = vmatprep.subr.bf16.mxu0 0
        %2431 = vmatpush1.bf16.msra.mxu0 0
        %2432 = vmatprep.subr.bf16.mxu0 0
        %2433 = vmatpush1.bf16.msra.mxu0 0
        %2434 = vmatprep.subr.bf16.mxu0 0
        %2435 = vmatpush1.bf16.msra.mxu0 0
        %2436 = vmatprep.subr.bf16.mxu0 0
        %2437 = vmatpush1.bf16.msra.mxu0 0
        %2438 = vmatprep.subr.bf16.mxu0 0
        %2439 = vmatpush1.bf16.msra.mxu0 %v2419
        %2440 = vmatprep.subr.bf16.mxu0 0
        %2441 = vmatpush2.bf16.msra.mxu0 0
        %2442 = vmatprep.subr.bf16.mxu0 0
        %2443 = vmatpush2.bf16.msra.mxu0 0
        %2444 = vmatprep.subr.bf16.mxu0 0
        %2445 = vmatpush2.bf16.msra.mxu0 0
        %2446 = vmatprep.subr.bf16.mxu0 0
        %2447 = vmatpush2.bf16.msra.mxu0 0
        %2448 = vmatprep.subr.bf16.mxu0 0
        %2449 = vmatpush2.bf16.msra.mxu0 0
        %2450 = vmatprep.subr.bf16.mxu0 0
        %2451 = vmatpush2.bf16.msra.mxu0 0
        %2452 = vmatprep.subr.bf16.mxu0 0
        %2453 = vmatpush2.bf16.msra.mxu0 0
        %2454 = vmatprep.subr.bf16.mxu0 0
        %2455 = vmatpush2.bf16.msra.mxu0 0
        %2456 = vmatprep.mubr.bf16.mxu0 0
        %2457 = vmatmul.mubr.bf16.gmra.mxu0 %v2422
        %v2458 = vpop.f32.mrf.mxu0
        %v2459 = vadd.f32 0.0, %v2458
        %v2460 = vpop.f32.mrf.mxu0
        %v2461 = vpop.f32.mrf.mxu0
        %v2462 = vadd.f32 0.0, %v2461
        %v2463 = vpop.f32.mrf.mxu0
        %2464 = vdwg.mxu0
        %v2467 = vunpack.c.l.b16 %v2409
        %v2468 = vunpack.c.l.b16 %v2410
        %v2469 = vpack.c.b16 %v2468, %v2467
        %v2472 = vsel %vm1915, %v2404, 0
        %2474 = vmatprep.subr.bf16.mxu0 0
        %2475 = vmatpush1.bf16.msra.mxu0 0
        %2476 = vmatprep.subr.bf16.mxu0 0
        %2477 = vmatpush1.bf16.msra.mxu0 0
        %2478 = vmatprep.subr.bf16.mxu0 0
        %2479 = vmatpush1.bf16.msra.mxu0 0
        %2480 = vmatprep.subr.bf16.mxu0 0
        %2481 = vmatpush1.bf16.msra.mxu0 0
        %2482 = vmatprep.subr.bf16.mxu0 0
        %2483 = vmatpush1.bf16.msra.mxu0 0
        %2484 = vmatprep.subr.bf16.mxu0 0
        %2485 = vmatpush1.bf16.msra.mxu0 0
        %2486 = vmatprep.subr.bf16.mxu0 0
        %2487 = vmatpush1.bf16.msra.mxu0 0
        %2488 = vmatprep.subr.bf16.mxu0 0
        %2489 = vmatpush1.bf16.msra.mxu0 %v2469
        %2490 = vmatprep.subr.bf16.mxu0 0
        %2491 = vmatpush2.bf16.msra.mxu0 0
        %2492 = vmatprep.subr.bf16.mxu0 0
        %2493 = vmatpush2.bf16.msra.mxu0 0
        %2494 = vmatprep.subr.bf16.mxu0 0
        %2495 = vmatpush2.bf16.msra.mxu0 0
        %2496 = vmatprep.subr.bf16.mxu0 0
        %2497 = vmatpush2.bf16.msra.mxu0 0
        %2498 = vmatprep.subr.bf16.mxu0 0
        %2499 = vmatpush2.bf16.msra.mxu0 0
        %2500 = vmatprep.subr.bf16.mxu0 0
        %2501 = vmatpush2.bf16.msra.mxu0 0
        %2502 = vmatprep.subr.bf16.mxu0 0
        %2503 = vmatpush2.bf16.msra.mxu0 0
        %2504 = vmatprep.subr.bf16.mxu0 0
        %2505 = vmatpush2.bf16.msra.mxu0 0
        %2506 = vmatprep.mubr.bf16.mxu0 0
        %2507 = vmatmul.mubr.bf16.gmra.mxu0 %v2472
        %v2508 = vpop.f32.mrf.mxu0
        %v2509 = vadd.f32 0.0, %v2508
        %v2510 = vpop.f32.mrf.mxu0
        %v2511 = vpop.f32.mrf.mxu0
        %v2512 = vadd.f32 0.0, %v2511
        %v2513 = vpop.f32.mrf.mxu0
        %2514 = vdwg.mxu0
        %v2517 = vunpack.c.l.b16 %v2411
        %v2518 = vunpack.c.l.b16 %v2412
        %v2519 = vpack.c.b16 %v2518, %v2517
        %v2522 = vsel %vm1915, %v2405, 0
        %2524 = vmatprep.subr.bf16.mxu0 0
        %2525 = vmatpush1.bf16.msra.mxu0 0
        %2526 = vmatprep.subr.bf16.mxu0 0
        %2527 = vmatpush1.bf16.msra.mxu0 0
        %2528 = vmatprep.subr.bf16.mxu0 0
        %2529 = vmatpush1.bf16.msra.mxu0 0
        %2530 = vmatprep.subr.bf16.mxu0 0
        %2531 = vmatpush1.bf16.msra.mxu0 0
        %2532 = vmatprep.subr.bf16.mxu0 0
        %2533 = vmatpush1.bf16.msra.mxu0 0
        %2534 = vmatprep.subr.bf16.mxu0 0
        %2535 = vmatpush1.bf16.msra.mxu0 0
        %2536 = vmatprep.subr.bf16.mxu0 0
        %2537 = vmatpush1.bf16.msra.mxu0 0
        %2538 = vmatprep.subr.bf16.mxu0 0
        %2539 = vmatpush1.bf16.msra.mxu0 %v2519
        %2540 = vmatprep.subr.bf16.mxu0 0
        %2541 = vmatpush2.bf16.msra.mxu0 0
        %2542 = vmatprep.subr.bf16.mxu0 0
        %2543 = vmatpush2.bf16.msra.mxu0 0
        %2544 = vmatprep.subr.bf16.mxu0 0
        %2545 = vmatpush2.bf16.msra.mxu0 0
        %2546 = vmatprep.subr.bf16.mxu0 0
        %2547 = vmatpush2.bf16.msra.mxu0 0
        %2548 = vmatprep.subr.bf16.mxu0 0
        %2549 = vmatpush2.bf16.msra.mxu0 0
        %2550 = vmatprep.subr.bf16.mxu0 0
        %2551 = vmatpush2.bf16.msra.mxu0 0
        %2552 = vmatprep.subr.bf16.mxu0 0
        %2553 = vmatpush2.bf16.msra.mxu0 0
        %2554 = vmatprep.subr.bf16.mxu0 0
        %2555 = vmatpush2.bf16.msra.mxu0 0
        %2556 = vmatprep.mubr.bf16.mxu0 0
        %2557 = vmatmul.mubr.bf16.gmra.mxu0 %v2522
        %v2558 = vpop.f32.mrf.mxu0
        %v2559 = vadd.f32 0.0, %v2558
        %v2560 = vpop.f32.mrf.mxu0
        %v2561 = vpop.f32.mrf.mxu0
        %v2562 = vadd.f32 0.0, %v2561
        %v2563 = vpop.f32.mrf.mxu0
        %2564 = vdwg.mxu0
        %v2567 = vunpack.c.l.b16 %v2413
        %v2568 = vunpack.c.l.b16 %v2414
        %v2569 = vpack.c.b16 %v2568, %v2567
        %v2572 = vsel %vm1915, %v2406, 0
        %2574 = vmatprep.subr.bf16.mxu0 0
        %2575 = vmatpush1.bf16.msra.mxu0 0
        %2576 = vmatprep.subr.bf16.mxu0 0
        %2577 = vmatpush1.bf16.msra.mxu0 0
        %2578 = vmatprep.subr.bf16.mxu0 0
        %2579 = vmatpush1.bf16.msra.mxu0 0
        %2580 = vmatprep.subr.bf16.mxu0 0
        %2581 = vmatpush1.bf16.msra.mxu0 0
        %2582 = vmatprep.subr.bf16.mxu0 0
        %2583 = vmatpush1.bf16.msra.mxu0 0
        %2584 = vmatprep.subr.bf16.mxu0 0
        %2585 = vmatpush1.bf16.msra.mxu0 0
        %2586 = vmatprep.subr.bf16.mxu0 0
        %2587 = vmatpush1.bf16.msra.mxu0 0
        %2588 = vmatprep.subr.bf16.mxu0 0
        %2589 = vmatpush1.bf16.msra.mxu0 %v2569
        %2590 = vmatprep.subr.bf16.mxu0 0
        %2591 = vmatpush2.bf16.msra.mxu0 0
        %2592 = vmatprep.subr.bf16.mxu0 0
        %2593 = vmatpush2.bf16.msra.mxu0 0
        %2594 = vmatprep.subr.bf16.mxu0 0
        %2595 = vmatpush2.bf16.msra.mxu0 0
        %2596 = vmatprep.subr.bf16.mxu0 0
        %2597 = vmatpush2.bf16.msra.mxu0 0
        %2598 = vmatprep.subr.bf16.mxu0 0
        %2599 = vmatpush2.bf16.msra.mxu0 0
        %2600 = vmatprep.subr.bf16.mxu0 0
        %2601 = vmatpush2.bf16.msra.mxu0 0
        %2602 = vmatprep.subr.bf16.mxu0 0
        %2603 = vmatpush2.bf16.msra.mxu0 0
        %2604 = vmatprep.subr.bf16.mxu0 0
        %2605 = vmatpush2.bf16.msra.mxu0 0
        %2606 = vmatprep.mubr.bf16.mxu0 0
        %2607 = vmatmul.mubr.bf16.gmra.mxu0 %v2572
        %v2608 = vpop.f32.mrf.mxu0
        %v2609 = vadd.f32 0.0, %v2608
        %v2610 = vpop.f32.mrf.mxu0
        %v2611 = vpop.f32.mrf.mxu0
        %v2612 = vadd.f32 0.0, %v2611
        %v2613 = vpop.f32.mrf.mxu0
        %2614 = vdwg.mxu0
        %v2615 = vsel %vm367, %v2459, 0.0
        %v2616 = vsel %vm367, %v2509, 0.0
        %v2617 = vadd.f32 %v2615, %v2616
        %v2618 = vsel %vm367, %v2559, 0.0
        %v2619 = vadd.f32 %v2617, %v2618
        %v2620 = vsel %vm367, %v2609, 0.0
        %v2621 = vadd.f32 %v2619, %v2620
        %v2622 = vsel %vm367, %v2462, 0.0
        %v2623 = vsel %vm367, %v2512, 0.0
        %v2624 = vadd.f32 %v2622, %v2623
        %v2625 = vsel %vm367, %v2562, 0.0
        %v2626 = vadd.f32 %v2624, %v2625
        %v2627 = vsel %vm367, %v2612, 0.0
        %v2628 = vadd.f32 %v2626, %v2627
        %v2629 = vadd.f32 %v2621, %v362
        %v2630 = vadd.f32 %v2628, %v363
        %v2631 = vld [vmem:[%s3] sm:$0x1]
        %v2632 = vmul.f32 %v2629, %v2629
        %v2633 = vmul.f32 %v2630, %v2630
        %v2634 = vsel %vm367, %v2632, 0.0
        %2635 = vadd.xlane.f32.xlu0 %v2634
        %v2636 = vpop.xlane.xlu0 %2635
        %v2637 = vsel %vm367, %v2633, 0.0
        %2638 = vadd.xlane.f32.xlu0 %v2637
        %v2639 = vpop.xlane.xlu0 %2638
        %v2640 = vmul.f32 %v2636, %v374
        %v2641 = vmul.f32 %v2639, %v374
        %v2642 = vadd.f32 %v2640, 1e-05
        %v2643 = vadd.f32 %v2641, 1e-05
        %v2644 = vrsqrt.pop %v2642
        %v2645 = vrsqrt.pop %v2643
        %v2646 = vmul.f32 %v2629, %v2644
        %v2647 = vmul.f32 %v2630, %v2645
        %v2649 = vlaneseq
        %v2650 = vshrl.u32 %v2649, 7
        %v2651 = vsub.s32 0, %v2650
        %v2652 = vrot.slane %v2631, %v2651
        %v2654 = vmul.f32 %v2646, %v2652
        %v2655 = vmul.f32 %v2647, %v2652
        %v2656 = vpack.c.bf16 %v2655, %v2654
        %v2657 = vld [vmem:[%s8] sm:$0xff]
        %v2658 = vld [vmem:[%s8 + $0x8] sm:$0xff]
        %v2659 = vld [vmem:[%s8 + $0x10] sm:$0xff]
        %v2660 = vld [vmem:[%s8 + $0x18] sm:$0xff]
        %v2661 = vld [vmem:[%s8 + $0x20] sm:$0xff]
        %v2662 = vld [vmem:[%s8 + $0x28] sm:$0xff]
        %v2663 = vld [vmem:[%s8 + $0x30] sm:$0xff]
        %v2664 = vld [vmem:[%s8 + $0x38] sm:$0xff]
        %v2673 = vunpack.c.l.b16 %v2657
        %v2674 = vunpack.c.h.b16 %v2657
        %v2675 = vunpack.c.l.b16 %v2658
        %v2676 = vunpack.c.h.b16 %v2658
        %v2677 = vunpack.c.l.b16 %v2659
        %v2678 = vunpack.c.h.b16 %v2659
        %v2679 = vunpack.c.l.b16 %v2660
        %v2680 = vunpack.c.h.b16 %v2660
        %v2681 = vunpack.c.l.b16 %v2661
        %v2682 = vunpack.c.h.b16 %v2661
        %v2683 = vunpack.c.l.b16 %v2662
        %v2684 = vunpack.c.h.b16 %v2662
        %v2685 = vunpack.c.l.b16 %v2663
        %v2686 = vunpack.c.h.b16 %v2663
        %v2687 = vunpack.c.l.b16 %v2664
        %v2688 = vunpack.c.h.b16 %v2664
        %v2689 = vpack.c.b16 %v2675, %v2673
        %v2690 = vpack.c.b16 %v2676, %v2674
        %v2691 = vpack.c.b16 %v2679, %v2677
        %v2692 = vpack.c.b16 %v2680, %v2678
        %v2693 = vpack.c.b16 %v2683, %v2681
        %v2694 = vpack.c.b16 %v2684, %v2682
        %v2695 = vpack.c.b16 %v2687, %v2685
        %v2696 = vpack.c.b16 %v2688, %v2686
        %v2706 = vsel %vm367, %v2656, 0
        %2708 = vmatprep.subr.bf16.mxu0 0
        %2709 = vmatpush1.bf16.msra.mxu0 0
        %2710 = vmatprep.subr.bf16.mxu0 0
        %2711 = vmatpush1.bf16.msra.mxu0 0
        %2712 = vmatprep.subr.bf16.mxu0 0
        %2713 = vmatpush1.bf16.msra.mxu0 0
        %2714 = vmatprep.subr.bf16.mxu0 0
        %2715 = vmatpush1.bf16.msra.mxu0 0
        %2716 = vmatprep.subr.bf16.mxu0 %v2696
        %2717 = vmatpush1.bf16.msra.mxu0 %v2695
        %2718 = vmatprep.subr.bf16.mxu0 %v2694
        %2719 = vmatpush1.bf16.msra.mxu0 %v2693
        %2720 = vmatprep.subr.bf16.mxu0 %v2692
        %2721 = vmatpush1.bf16.msra.mxu0 %v2691
        %2722 = vmatprep.subr.bf16.mxu0 %v2690
        %2723 = vmatpush1.bf16.msra.mxu0 %v2689
        %2724 = vmatprep.subr.bf16.mxu0 0
        %2725 = vmatpush2.bf16.msra.mxu0 0
        %2726 = vmatprep.subr.bf16.mxu0 0
        %2727 = vmatpush2.bf16.msra.mxu0 0
        %2728 = vmatprep.subr.bf16.mxu0 0
        %2729 = vmatpush2.bf16.msra.mxu0 0
        %2730 = vmatprep.subr.bf16.mxu0 0
        %2731 = vmatpush2.bf16.msra.mxu0 0
        %2732 = vmatprep.subr.bf16.mxu0 0
        %2733 = vmatpush2.bf16.msra.mxu0 0
        %2734 = vmatprep.subr.bf16.mxu0 0
        %2735 = vmatpush2.bf16.msra.mxu0 0
        %2736 = vmatprep.subr.bf16.mxu0 0
        %2737 = vmatpush2.bf16.msra.mxu0 0
        %2738 = vmatprep.subr.bf16.mxu0 0
        %2739 = vmatpush2.bf16.msra.mxu0 0
        %2740 = vmatprep.mubr.bf16.mxu0 0
        %2741 = vmatmul.mubr.bf16.gmra.mxu0 %v2706
        %v2742 = vpop.f32.mrf.mxu0
        %v2743 = vadd.f32 0.0, %v2742
        %v2744 = vpop.f32.mrf.mxu0
        %v2745 = vadd.f32 0.0, %v2744
        %v2746 = vpop.f32.mrf.mxu0
        %v2747 = vadd.f32 0.0, %v2746
        %v2748 = vpop.f32.mrf.mxu0
        %v2749 = vadd.f32 0.0, %v2748
        %2750 = vdwg.mxu0
        %v2751 = vxor.u32 %v2745, 2147483648
        %v2752 = vxor.u32 %v2749, 2147483648
        %v2753 = vmul.f32 %v2751, 1.442695
        %v2754 = vpow.pop %v2753
        %v2755 = vmul.f32 %v2752, 1.442695
        %v2756 = vpow.pop %v2755
        %v2757 = vadd.f32 %v2754, 1.0
        %v2758 = vadd.f32 %v2756, 1.0
        %v2759 = vrcp.pop %v2757
        %v2760 = vmul.f32 1.0, %v2759
        %v2761 = vrcp.pop %v2758
        %v2762 = vmul.f32 1.0, %v2761
        %v2763 = vmul.f32 %v2745, %v2760
        %v2764 = vmul.f32 %v2749, %v2762
        %v2765 = vmul.f32 %v2743, %v2763
        %v2766 = vmul.f32 %v2747, %v2764
        %v2767 = vpack.c.bf16 %v2766, %v2765
        %v2768 = vld [vmem:[%s9] sm:$0xf]
        %v2769 = vld [vmem:[%s9 + $0x4] sm:$0xf]
        %v2770 = vld [vmem:[%s9 + $0x8] sm:$0xf]
        %v2771 = vld [vmem:[%s9 + $0xc] sm:$0xf]
        %v2772 = vld [vmem:[%s9 + $0x10] sm:$0xf]
        %v2773 = vld [vmem:[%s9 + $0x14] sm:$0xf]
        %v2774 = vld [vmem:[%s9 + $0x18] sm:$0xf]
        %v2775 = vld [vmem:[%s9 + $0x1c] sm:$0xf]
        %v2776 = vld [vmem:[%s9 + $0x20] sm:$0xf]
        %v2777 = vld [vmem:[%s9 + $0x24] sm:$0xf]
        %v2778 = vld [vmem:[%s9 + $0x28] sm:$0xf]
        %v2779 = vld [vmem:[%s9 + $0x2c] sm:$0xf]
        %v2780 = vld [vmem:[%s9 + $0x30] sm:$0xf]
        %v2781 = vld [vmem:[%s9 + $0x34] sm:$0xf]
        %v2782 = vld [vmem:[%s9 + $0x38] sm:$0xf]
        %v2783 = vld [vmem:[%s9 + $0x3c] sm:$0xf]
        %v2800 = vunpack.c.l.b16 %v2768
        %v2801 = vunpack.c.l.b16 %v2769
        %v2802 = vunpack.c.l.b16 %v2770
        %v2803 = vunpack.c.l.b16 %v2771
        %v2804 = vunpack.c.l.b16 %v2772
        %v2805 = vunpack.c.l.b16 %v2773
        %v2806 = vunpack.c.l.b16 %v2774
        %v2807 = vunpack.c.l.b16 %v2775
        %v2808 = vunpack.c.l.b16 %v2776
        %v2809 = vunpack.c.l.b16 %v2777
        %v2810 = vunpack.c.l.b16 %v2778
        %v2811 = vunpack.c.l.b16 %v2779
        %v2812 = vunpack.c.l.b16 %v2780
        %v2813 = vunpack.c.l.b16 %v2781
        %v2814 = vunpack.c.l.b16 %v2782
        %v2815 = vunpack.c.l.b16 %v2783
        %v2816 = vpack.c.b16 %v2801, %v2800
        %v2817 = vpack.c.b16 %v2803, %v2802
        %v2818 = vpack.c.b16 %v2805, %v2804
        %v2819 = vpack.c.b16 %v2807, %v2806
        %v2820 = vpack.c.b16 %v2809, %v2808
        %v2821 = vpack.c.b16 %v2811, %v2810
        %v2822 = vpack.c.b16 %v2813, %v2812
        %v2823 = vpack.c.b16 %v2815, %v2814
        %2832 = vmatprep.subr.bf16.mxu0 0
        %2833 = vmatpush1.bf16.msra.mxu0 %v2823
        %2834 = vmatprep.subr.bf16.mxu0 0
        %2835 = vmatpush1.bf16.msra.mxu0 %v2822
        %2836 = vmatprep.subr.bf16.mxu0 0
        %2837 = vmatpush1.bf16.msra.mxu0 %v2821
        %2838 = vmatprep.subr.bf16.mxu0 0
        %2839 = vmatpush1.bf16.msra.mxu0 %v2820
        %2840 = vmatprep.subr.bf16.mxu0 0
        %2841 = vmatpush1.bf16.msra.mxu0 %v2819
        %2842 = vmatprep.subr.bf16.mxu0 0
        %2843 = vmatpush1.bf16.msra.mxu0 %v2818
        %2844 = vmatprep.subr.bf16.mxu0 0
        %2845 = vmatpush1.bf16.msra.mxu0 %v2817
        %2846 = vmatprep.subr.bf16.mxu0 0
        %2847 = vmatpush1.bf16.msra.mxu0 %v2816
        %2848 = vmatprep.subr.bf16.mxu0 0
        %2849 = vmatpush2.bf16.msra.mxu0 0
        %2850 = vmatprep.subr.bf16.mxu0 0
        %2851 = vmatpush2.bf16.msra.mxu0 0
        %2852 = vmatprep.subr.bf16.mxu0 0
        %2853 = vmatpush2.bf16.msra.mxu0 0
        %2854 = vmatprep.subr.bf16.mxu0 0
        %2855 = vmatpush2.bf16.msra.mxu0 0
        %2856 = vmatprep.subr.bf16.mxu0 0
        %2857 = vmatpush2.bf16.msra.mxu0 0
        %2858 = vmatprep.subr.bf16.mxu0 0
        %2859 = vmatpush2.bf16.msra.mxu0 0
        %2860 = vmatprep.subr.bf16.mxu0 0
        %2861 = vmatpush2.bf16.msra.mxu0 0
        %2862 = vmatprep.subr.bf16.mxu0 0
        %2863 = vmatpush2.bf16.msra.mxu0 0
        %2864 = vmatprep.mubr.bf16.mxu0 0
        %2865 = vmatmul.mubr.bf16.gmra.mxu0 %v2767
        %v2866 = vpop.f32.mrf.mxu0
        %v2867 = vadd.f32 0.0, %v2866
        %v2868 = vpop.f32.mrf.mxu0
        %v2869 = vpop.f32.mrf.mxu0
        %v2870 = vadd.f32 0.0, %v2869
        %v2871 = vpop.f32.mrf.mxu0
        %2872 = vdwg.mxu0
        %2875 = vrot.lane.b32.xlu0 %v2629, 64
        %v2876 = vpop.permute.xlu0 %2875
        %2877 = vrot.lane.b32.xlu0 %v2630, 64
        %v2878 = vpop.permute.xlu0 %2877
        %v2881 = vsel %vm367, %v2867, %v2876
        %v2882 = vsel %vm367, %v2870, %v2878
        %2883 = vst [vmem:[%s353] sm:$0xff] %v2881
        %2884 = vst [vmem:[%s353 + $0x8] sm:$0xff] %v2882
        %s2885 = sand.u32 %s247, 1
        %s2886 = scalar_lea.sflag [#allocation3], %s2885
        %s2887 = sand.u32 %s247, 1
        %s2888 = smul.addr %s2887, 16
        %s2889 = scalar_lea.vmem [#allocation2], %s2888
        // Predicated region
        $region61: #{tpu_custom_call.1} parent=59 // pred_check
          %p2890 = pneg %p257
        $region62: #{tpu_custom_call.1} parent=59 // pred_check_branch
          %2892 = sbr.rel (%p2890) target = $region64
        $region63: #{tpu_custom_call.1} parent=59 // pred_region
          %s2893 = smul.u32 2, %s24
          %s2895 = ssub.s32 256, 256
          %2896 = vsyncadd %s2886, %s2895
          %s2897 = smul.addr %s2893, 128
          %s2898 = scalar_lea.hbm %s10, %s2897
          %s2899 = sshll.u32 %s2889, 4
          %s2900 = int_to_ptr.vmem [resolvable:$true] %s2899
          %2905 = dma.vmem_to_hbm [thread:$0]  %s2900, 256, %s2898, %s2886, 128, 128, 8
        $region64: #{tpu_custom_call.1} parent=59 // pred_fallthru
          _
      $region60: #{tpu_custom_call.1} parent=5 // pred_fallthru
        _
      %p2906 = scmp.le.s32.totalorder 2, %s19
      // Predicated region
      $region65: #{tpu_custom_call.1} parent=5 // pred_check
        %p2907 = pneg %p2906
      $region66: #{tpu_custom_call.1} parent=5 // pred_check_branch
        %2909 = sbr.rel (%p2907) target = $region68
      $region67: #{tpu_custom_call.1} parent=5 // pred_region
        %s2910 = ssub.s32 %s19, 2
        // Predicated region
        $region69: #{tpu_custom_call.1} parent=67 // pred_check
          %p2911 = pneg %p263
        $region70: #{tpu_custom_call.1} parent=67 // pred_check_branch
          %2913 = sbr.rel (%p2911) target = $region72
        $region71: #{tpu_custom_call.1} parent=67 // pred_region
          %s2914 = sand.u32 %s248, 1
          %s2915 = scalar_lea.sflag [#allocation3], %s2914
          %s2916 = sand.u32 %s248, 1
          %s2917 = smul.addr %s2916, 16
          %s2918 = scalar_lea.vmem [#allocation2], %s2917
          %2919 = dma.done %s2915, 256
        $region72: #{tpu_custom_call.1} parent=67 // pred_fallthru
          _
      $region68: #{tpu_custom_call.1} parent=5 // pred_fallthru
        _
    $region6: #{tpu_custom_call.1} parent=1 // loop_footer
      %s23 = sadd.s32 1, %s19
    $region7: #{tpu_custom_call.1} parent=1 // loop_footer_branch
      %18 = sbr.rel target = $region3
    $region8: #{tpu_custom_call.1} parent=1 // loop_exit
      _
    %2920 = vsyncpa [#allocation3], 1
    %s2921 = scalar_lea.sflag [#allocation3], 1
    %2922 = vsyncpa %s2921, 1

</llo_original>
